<compile_context>
chip_gen: v6e
topology: v6e:2x2x1
jax: 0.10.0
libtpu: 0.0.40
codegen_flags: <defaults>
</compile_context>

<pallas_src>
import functools

import jax
import jax.numpy as jnp
import numpy as np
from jax.experimental import pallas as pl
from jax.experimental.pallas import tpu as pltpu


# ----------------------------------------------------------------------------- kernel
def basic_block_kernel(*refs, num_layers, pool_size, layer_meta):
    """Fused BasicBlock forward (NCL layout, sequence on lanes).

    refs layout:
      inputs : x (N,C0,L), psel (P,L,L_out), then per layer (wbf, bb, wof, bo)
      outputs: out (N, C0+C_last, L_out)
      scratch: per layer one padded cat([x, y]) slab (Cin+CB, Lp), f32
    layer_meta[li] = (pad_l, pad_r, lb, lo, Cin, CB, Kb, Ko, Co)   (static)
    """
    n_in = 2 + 4 * num_layers
    x_ref, psel_ref = refs[0], refs[1]
    w_refs = refs[2:n_in]
    out_ref = refs[n_in]
    slabs = refs[n_in + 1:n_in + 1 + num_layers]

    N, C0, L = x_ref.shape
    P = pool_size

    # ---- zero ONLY the pad columns of each slab, once (interior columns are fully
    #      overwritten every batch element / layer -> no whole-slab memset) ---------
    for li in range(num_layers):
        pad_l, pad_r = layer_meta[li][0], layer_meta[li][1]
        slab = slabs[li]
        Ccat, Lp = slab.shape
        if pad_l > 0:
            slab[:, 0:pad_l] = jnp.zeros((Ccat, pad_l), slab.dtype)
        if pad_r > 0:
            slab[:, Lp - pad_r:Lp] = jnp.zeros((Ccat, pad_r), slab.dtype)

    # ---- hoisted bias loads + broadcasts (not re-done inside the loops) ------------
    bcast_biases = []
    for li in range(num_layers):
        bb_ref, bo_ref = w_refs[4 * li + 1], w_refs[4 * li + 3]
        bcast_biases.append((jnp.broadcast_to(bb_ref[...], (bb_ref.shape[0], L)),
                             jnp.broadcast_to(bo_ref[...], (bo_ref.shape[0], L))))
    psel = psel_ref[...]                                  # (P, L, L_out) one-hot f32

    # TODO(synk): replace the static batch unroll with a "parallel" grid axis for
    # production batch sizes (v7x megacore + pipelined HBM<->VMEM).
    for n in range(N):
        pad_l0 = layer_meta[0][0]
        slabs[0][0:C0, pad_l0:pad_l0 + L] = x_ref[n]      # stage block input

        h = None
        for li in range(num_layers):                      # dropout = eval identity
            pad_l, pad_r, lb, lo, Cin, CB, Kb, Ko, Co = layer_meta[li]
            slab = slabs[li]
            wbf_ref = w_refs[4 * li + 0]                  # (CB, Kb*Cin)  bf16
            wof_ref = w_refs[4 * li + 2]                  # (Co, Ko*(Cin+CB)) bf16
            bb, bo = bcast_biases[li]

            # --- all parallel branch convs folded into ONE im2col matmul -----------
            off_b = pad_l - lb
            imc_b = jnp.concatenate(
                [slab[0:Cin, off_b + k:off_b + k + L] for k in range(Kb)], axis=0)
            y = jnp.dot(wbf_ref[...], imc_b.astype(jnp.bfloat16),
                        preferred_element_type=jnp.float32)          # (CB, L) f32
            y = jnp.maximum(y + bb, 0.0)
            slab[Cin:Cin + CB, pad_l:pad_l + L] = y       # cat([x, y]) built in place

            # --- out_conv over cat([x, y]) as ONE im2col matmul ---------------------
            off_o = pad_l - lo
            imc_o = jnp.concatenate(
                [slab[:, off_o + k:off_o + k + L] for k in range(Ko)], axis=0)
            z = jnp.dot(wof_ref[...], imc_o.astype(jnp.bfloat16),
                        preferred_element_type=jnp.float32)          # (Co, L) f32
            z = jnp.maximum(z + bo, 0.0)

            if li + 1 < num_layers:
                pad_l_n = layer_meta[li + 1][0]
                slabs[li + 1][0:Co, pad_l_n:pad_l_n + L] = z
            else:
                h = z

        # --- cat([x, h], channel) + MaxPool1d(P) --------------------------------
        # pooled[c, j] = max_p full[c, j*P + p]; the stride-P downsample is done with
        # exact one-hot selection matmuls (f32) -> no strided lane loads / reshapes,
        # and the pooled output is emitted lane-dense in L_out in one store per n.
        full = jnp.concatenate([x_ref[n], h], axis=0)                # (C0+Co, L) f32
        pooled = jnp.dot(full, psel[0], preferred_element_type=jnp.float32)
        for p in range(1, P):
            pooled = jnp.maximum(
                pooled, jnp.dot(full, psel[p], preferred_element_type=jnp.float32))
        out_ref[n] = pooled


# ----------------------------------------------------------------------------- wrapper
_VMEM_SPEC = pl.BlockSpec(memory_space=pltpu.MemorySpace.VMEM)


def _fold_layer_params(layer):
    """Host-side, one-time weight prep for one CombConvLayer.

    Returns ((wbf, bb, wof, bo), meta):
      wbf (CB, Kb*Cin)          bf16 : all branch convs folded into one Kb-tap conv,
                                       flattened [tap-major, channel-minor]
      bb  (CB, 1)               f32
      wof (Co, Ko*(Cin+CB))     bf16 : out_conv flattened the same way (input channel
                                       order matches torch cat([x, y_0, ..., y_B-1]))
      bo  (Co, 1)               f32
      meta = (pad_l, pad_r, lb, lo, Cin, CB, Kb, Ko, Co)
    """
    ws = [np.asarray(w, np.float32) for w, _ in layer["convs"]]
    bs = [np.asarray(b, np.float32) for _, b in layer["convs"]]
    out_w = np.asarray(layer["out_w"], np.float32)        # (Ko, Cin + CB, Co)
    out_b = np.asarray(layer["out_b"], np.float32)

    Cin, CoutB = ws[0].shape[1], ws[0].shape[2]
    CB = len(ws) * CoutB
    Kb = max(w.shape[0] for w in ws)
    lb = (Kb - 1) // 2

    # Fold the parallel branch convs: zero taps pad each branch kernel so its
    # 'same'-padding centre (stride=1 _auto_pad_1d) is preserved.
    wb = np.zeros((Kb, Cin, CB), np.float32)
    for i, w in enumerate(ws):
        Ki = w.shape[0]
        off = lb - (Ki - 1) // 2
        wb[off:off + Ki, :, i * CoutB:(i + 1) * CoutB] = w
    bb = np.concatenate(bs).reshape(-1, 1)                # (CB, 1)

    Ko, Ccat, Co = out_w.shape
    lo = (Ko - 1) // 2

    # Weights-stationary flattening matching the in-kernel im2col row order:
    #   W_flat[co, k*C + c] = W[k, c, co]
    wbf = np.transpose(wb, (2, 0, 1)).reshape(CB, Kb * Cin)
    wof = np.transpose(out_w, (2, 0, 1)).reshape(Co, Ko * Ccat)
    bo = out_b.reshape(-1, 1)

    pad_l = max(lb, lo)
    pad_r = max(Kb - 1 - lb, Ko - 1 - lo)
    meta = (pad_l, pad_r, lb, lo, Cin, CB, Kb, Ko, Co)
    params = (jnp.asarray(wbf, jnp.bfloat16), jnp.asarray(bb, jnp.float32),
              jnp.asarray(wof, jnp.bfloat16), jnp.asarray(bo, jnp.float32))
    return params, meta


def prepare_basic_block_params(params):
    flat, meta = [], []
    for layer in params:
        p, m = _fold_layer_params(layer)
        flat.extend(p)
        meta.append(m)
    return tuple(flat), tuple(meta)


def basic_block_fused(x_ncl, flat_params, *, pool_size, layer_meta):
    """BasicBlock.forward. Input/output in PyTorch NCL layout (no wrapper reshapes)."""
    num_layers = len(layer_meta)
    x = x_ncl.astype(jnp.float32)                         # (N, C0, L) consumed as-is
    N, C0, L = x.shape
    P = pool_size
    L_out = L // P
    C_last = layer_meta[-1][8]

    # One-hot lane-selection matrices for the stride-P max-pool downsample:
    # psel[p][l, j] = 1 iff l == j*P + p  (constant-folded at trace time).
    psel_np = np.zeros((P, L, L_out), np.float32)
    for p in range(P):
        for j in range(L_out):
            psel_np[p, j * P + p, j] = 1.0
    psel = jnp.asarray(psel_np)

    # One padded cat([x, y]) slab per layer, reused across batch elements.
    # TODO(synk): for production L on v7x (64 MiB VMEM) store slabs in bf16 and
    # ping-pong two max-sized slabs instead of one per layer.
    scratch = [pltpu.VMEM((m[4] + m[5], L + m[0] + m[1]), jnp.float32)
               for m in layer_meta]

    return pl.pallas_call(
        functools.partial(basic_block_kernel, num_layers=num_layers,
                          pool_size=P, layer_meta=layer_meta),
        out_shape=jax.ShapeDtypeStruct((N, C0 + C_last, L_out), jnp.float32),
        in_specs=[_VMEM_SPEC] * (2 + 4 * num_layers),
        out_specs=_VMEM_SPEC,
        scratch_shapes=scratch,
        # 64 MiB cap (<= physical on v5e/v6e/v7x). Raise toward ~100 MiB on v5e/v6e
        # for large resident tiles; keep <= ~32 MiB for a v7x build.
        compiler_params=pltpu.CompilerParams(vmem_limit_bytes=64 * 1024 * 1024),
    )(x, psel, *flat_params)


# ----------------------------------------------------------------------------- reference
def _conv1d_same_ref(x, w, b):
    """Pure-JAX 'same' conv (stride 1) matching _auto_pad_1d + Conv1d. x: (N, L, Cin)."""
    K = w.shape[0]
    left = (K - 1) // 2
    xp = jnp.pad(x, ((0, 0), (left, K - 1 - left), (0, 0)))
    L = x.shape[1]
    out = jnp.zeros(x.shape[:2] + (w.shape[2],), jnp.float32)
    for k in range(K):
        out = out + jnp.einsum("nlc,co->nlo", xp[:, k:k + L, :], w[k])
    return out + b


def basic_block_reference(x_ncl, params, pool_size):
    """Pure-JAX mirror of the PyTorch module (eval mode), full f32."""
    x = jnp.transpose(x_ncl, (0, 2, 1))
    h = x
    for lp in params:
        outs = [h]
        for w, b in lp["convs"]:
            outs.append(jax.nn.relu(_conv1d_same_ref(h, w, b)))
        cat = jnp.concatenate(outs, axis=-1)              # dropout: identity (eval)
        h = jax.nn.relu(_conv1d_same_ref(cat, lp["out_w"], lp["out_b"]))
    full = jnp.concatenate([x, h], axis=-1)
    N, L, C = full.shape
    L_out = L // pool_size
    pooled = jnp.max(full[:, :L_out * pool_size, :].reshape(N, L_out, pool_size, C),
                     axis=2)
    return jnp.transpose(pooled, (0, 2, 1))


# ----------------------------------------------------------------------------- params
def _init_conv(key, cin, cout, k):
    """Deterministic Conv1d-style init; weight stored as (K, Cin, Cout)."""
    kw, kb = jax.random.split(key)
    bound = 1.0 / np.sqrt(cin * k)
    w = jax.random.uniform(kw, (k, cin, cout), jnp.float32, -bound, bound)
    b = jax.random.uniform(kb, (cout,), jnp.float32, -bound, bound)
    return w, b


def init_basic_block(key, in_channels, layer_channels, comb_kernel_sizes,
                     comb_out_kernel_size):
    layers = []
    ins = [in_channels] + list(layer_channels[:-1])
    for inc, outc in zip(ins, layer_channels):
        convs = []
        for ks in comb_kernel_sizes:
            key, sub = jax.random.split(key)
            convs.append(_init_conv(sub, inc, outc, ks))
        cat_ch = inc + len(comb_kernel_sizes) * outc
        key, sub = jax.random.split(key)
        out_w, out_b = _init_conv(sub, cat_ch, outc, comb_out_kernel_size)
        layers.append({"convs": convs, "out_w": out_w, "out_b": out_b})
    return layers


# ----------------------------------------------------------------------------- main
if __name__ == "__main__":
    key = jax.random.PRNGKey(0)
    kx, kp = jax.random.split(key)

    # Small config consistent with the module's (N, C_in, L) forward signature.
    N, C_in, L = 2, 4, 16
    layer_channels = [8, 8]
    comb_kernel_sizes = [2, 3, 5]
    comb_out_kernel_size = 3
    pool_size = 2
    # drop_rate: dropout is identity in inference/eval mode.

    x = jax.random.normal(kx, (N, C_in, L), jnp.float32)
    params = init_basic_block(kp, C_in, layer_channels, comb_kernel_sizes,
                              comb_out_kernel_size)
    flat_params, layer_meta = prepare_basic_block_params(params)   # one-time folding

    fused = jax.jit(functools.partial(basic_block_fused, pool_size=pool_size,
                                      layer_meta=layer_meta))
    out = jax.block_until_ready(fused(x, flat_params))

    expected_shape = (N, C_in + layer_channels[-1], L // pool_size)
    assert out.shape == expected_shape, (out.shape, expected_shape)
    assert bool(jnp.all(jnp.isfinite(out)))

    ref = basic_block_reference(x, params, pool_size)
    # Tolerance covers bf16 MXU inputs (weights + im2col operands); tighten to ~1e-5
    # if the dots are kept in full f32.
    np.testing.assert_allclose(np.asarray(out), np.asarray(ref), rtol=2e-2, atol=2e-2)

    print("KERNEL_OK")
</pallas_src>

<mosaic_0001>
module attributes {stable_mosaic.version = 11 : i64} {
  func.func @basic_block_kernel(%arg0: memref<2x4x16xf32, #tpu.memory_space<vmem>>, %arg1: memref<2x16x8xf32, #tpu.memory_space<vmem>>, %arg2: memref<24x20xbf16, #tpu.memory_space<vmem>>, %arg3: memref<24x1xf32, #tpu.memory_space<vmem>>, %arg4: memref<8x84xbf16, #tpu.memory_space<vmem>>, %arg5: memref<8x1xf32, #tpu.memory_space<vmem>>, %arg6: memref<24x40xbf16, #tpu.memory_space<vmem>>, %arg7: memref<24x1xf32, #tpu.memory_space<vmem>>, %arg8: memref<8x96xbf16, #tpu.memory_space<vmem>>, %arg9: memref<8x1xf32, #tpu.memory_space<vmem>>, %arg10: memref<2x12x8xf32, #tpu.memory_space<vmem>>, %arg11: memref<28x20xf32, #tpu.memory_space<vmem>>, %arg12: memref<32x20xf32, #tpu.memory_space<vmem>>) attributes {dimension_semantics = [], scalar_prefetch = 0 : i64, scratch_operands = 2 : i64, tpu.core_type = #tpu.core_type<tc>} {
    %cst = arith.constant 0.000000e+00 : f32
    %0 = vector.broadcast %cst : f32 to vector<28x2xf32>
    %c0 = arith.constant 0 : index
    %c0_0 = arith.constant 0 : index
    %1 = vector.load %arg11[%c0, %c0_0] : memref<28x20xf32, #tpu.memory_space<vmem>>, vector<28x2xf32>
    tpu.vector_store %arg11[%c0, %c0_0], %0 {strides = array<i32>} : memref<28x20xf32, #tpu.memory_space<vmem>>, vector<28x2xf32>,
    %cst_1 = arith.constant 0.000000e+00 : f32
    %2 = vector.broadcast %cst_1 : f32 to vector<28x2xf32>
    %c0_2 = arith.constant 0 : index
    %c18 = arith.constant 18 : index
    %3 = vector.load %arg11[%c0_2, %c18] : memref<28x20xf32, #tpu.memory_space<vmem>>, vector<28x2xf32>
    tpu.vector_store %arg11[%c0_2, %c18], %2 {strides = array<i32>} : memref<28x20xf32, #tpu.memory_space<vmem>>, vector<28x2xf32>,
    %cst_3 = arith.constant 0.000000e+00 : f32
    %4 = vector.broadcast %cst_3 : f32 to vector<32x2xf32>
    %c0_4 = arith.constant 0 : index
    %c0_5 = arith.constant 0 : index
    %5 = vector.load %arg12[%c0_4, %c0_5] : memref<32x20xf32, #tpu.memory_space<vmem>>, vector<32x2xf32>
    tpu.vector_store %arg12[%c0_4, %c0_5], %4 {strides = array<i32>} : memref<32x20xf32, #tpu.memory_space<vmem>>, vector<32x2xf32>,
    %cst_6 = arith.constant 0.000000e+00 : f32
    %6 = vector.broadcast %cst_6 : f32 to vector<32x2xf32>
    %c0_7 = arith.constant 0 : index
    %c18_8 = arith.constant 18 : index
    %7 = vector.load %arg12[%c0_7, %c18_8] : memref<32x20xf32, #tpu.memory_space<vmem>>, vector<32x2xf32>
    tpu.vector_store %arg12[%c0_7, %c18_8], %6 {strides = array<i32>} : memref<32x20xf32, #tpu.memory_space<vmem>>, vector<32x2xf32>,
    %c0_9 = arith.constant 0 : index
    %c0_10 = arith.constant 0 : index
    %8 = vector.load %arg3[%c0_9, %c0_10] : memref<24x1xf32, #tpu.memory_space<vmem>>, vector<24x1xf32>
    %9 = vector.shape_cast %8 : vector<24x1xf32> to vector<24x1xf32>
    %10 = vector.broadcast %9 : vector<24x1xf32> to vector<24x16xf32>
    %c0_11 = arith.constant 0 : index
    %c0_12 = arith.constant 0 : index
    %11 = vector.load %arg5[%c0_11, %c0_12] : memref<8x1xf32, #tpu.memory_space<vmem>>, vector<8x1xf32>
    %12 = vector.shape_cast %11 : vector<8x1xf32> to vector<8x1xf32>
    %13 = vector.broadcast %12 : vector<8x1xf32> to vector<8x16xf32>
    %c0_13 = arith.constant 0 : index
    %c0_14 = arith.constant 0 : index
    %14 = vector.load %arg7[%c0_13, %c0_14] : memref<24x1xf32, #tpu.memory_space<vmem>>, vector<24x1xf32>
    %15 = vector.shape_cast %14 : vector<24x1xf32> to vector<24x1xf32>
    %16 = vector.broadcast %15 : vector<24x1xf32> to vector<24x16xf32>
    %c0_15 = arith.constant 0 : index
    %c0_16 = arith.constant 0 : index
    %17 = vector.load %arg9[%c0_15, %c0_16] : memref<8x1xf32, #tpu.memory_space<vmem>>, vector<8x1xf32>
    %18 = vector.shape_cast %17 : vector<8x1xf32> to vector<8x1xf32>
    %19 = vector.broadcast %18 : vector<8x1xf32> to vector<8x16xf32>
    %c0_17 = arith.constant 0 : index
    %c0_18 = arith.constant 0 : index
    %c0_19 = arith.constant 0 : index
    %20 = vector.load %arg1[%c0_17, %c0_18, %c0_19] : memref<2x16x8xf32, #tpu.memory_space<vmem>>, vector<2x16x8xf32>
    %c0_20 = arith.constant 0 : index
    %c0_21 = arith.constant 0 : index
    %c0_22 = arith.constant 0 : index
    %21 = vector.load %arg0[%c0_20, %c0_21, %c0_22] : memref<2x4x16xf32, #tpu.memory_space<vmem>>, vector<1x4x16xf32>
    %22 = vector.shape_cast %21 : vector<1x4x16xf32> to vector<4x16xf32>
    %c0_23 = arith.constant 0 : index
    %c2 = arith.constant 2 : index
    %23 = vector.load %arg11[%c0_23, %c2] : memref<28x20xf32, #tpu.memory_space<vmem>>, vector<4x16xf32>
    tpu.vector_store %arg11[%c0_23, %c2], %22 {strides = array<i32>} : memref<28x20xf32, #tpu.memory_space<vmem>>, vector<4x16xf32>,
    %c0_24 = arith.constant 0 : index
    %c0_25 = arith.constant 0 : index
    %24 = vector.load %arg11[%c0_24, %c0_25] : memref<28x20xf32, #tpu.memory_space<vmem>>, vector<4x16xf32>
    %c0_26 = arith.constant 0 : index
    %c1 = arith.constant 1 : index
    %25 = vector.load %arg11[%c0_26, %c1] : memref<28x20xf32, #tpu.memory_space<vmem>>, vector<4x16xf32>
    %c0_27 = arith.constant 0 : index
    %c2_28 = arith.constant 2 : index
    %26 = vector.load %arg11[%c0_27, %c2_28] : memref<28x20xf32, #tpu.memory_space<vmem>>, vector<4x16xf32>
    %c0_29 = arith.constant 0 : index
    %c3 = arith.constant 3 : index
    %27 = vector.load %arg11[%c0_29, %c3] : memref<28x20xf32, #tpu.memory_space<vmem>>, vector<4x16xf32>
    %c0_30 = arith.constant 0 : index
    %c4 = arith.constant 4 : index
    %28 = vector.load %arg11[%c0_30, %c4] : memref<28x20xf32, #tpu.memory_space<vmem>>, vector<4x16xf32>
    %29 = tpu.concatenate %24, %25, %26, %27, %28 in 0 : vector<4x16xf32>, vector<4x16xf32>, vector<4x16xf32>, vector<4x16xf32>, vector<4x16xf32> -> vector<20x16xf32>
    %c0_31 = arith.constant 0 : index
    %c0_32 = arith.constant 0 : index
    %30 = vector.load %arg2[%c0_31, %c0_32] : memref<24x20xbf16, #tpu.memory_space<vmem>>, vector<24x20xbf16>
    %31 = arith.truncf %29 : vector<20x16xf32> to vector<20x16xbf16>
    %cst_33 = arith.constant dense<0.000000e+00> : vector<24x16xf32>
    %32 = tpu.matmul %30, %31, %cst_33 {dimension_numbers = #tpu.dot_dimension_numbers<[1], [0], [0], [1], [0, 0, 1, 1], [], []>} : vector<24x20xbf16>, vector<20x16xbf16>, vector<24x16xf32> -> vector<24x16xf32>
    %33 = arith.addf %32, %10 : vector<24x16xf32>
    %cst_34 = arith.constant 0.000000e+00 : f32
    %34 = vector.broadcast %cst_34 : f32 to vector<24x16xf32>
    %35 = arith.maximumf %33, %34 : vector<24x16xf32>
    %c4_35 = arith.constant 4 : index
    %c2_36 = arith.constant 2 : index
    %36 = vector.load %arg11[%c4_35, %c2_36] : memref<28x20xf32, #tpu.memory_space<vmem>>, vector<24x16xf32>
    tpu.vector_store %arg11[%c4_35, %c2_36], %35 {strides = array<i32>} : memref<28x20xf32, #tpu.memory_space<vmem>>, vector<24x16xf32>,
    %c0_37 = arith.constant 0 : index
    %c1_38 = arith.constant 1 : index
    %37 = vector.load %arg11[%c0_37, %c1_38] : memref<28x20xf32, #tpu.memory_space<vmem>>, vector<28x16xf32>
    %c0_39 = arith.constant 0 : index
    %c2_40 = arith.constant 2 : index
    %38 = vector.load %arg11[%c0_39, %c2_40] : memref<28x20xf32, #tpu.memory_space<vmem>>, vector<28x16xf32>
    %c0_41 = arith.constant 0 : index
    %c3_42 = arith.constant 3 : index
    %39 = vector.load %arg11[%c0_41, %c3_42] : memref<28x20xf32, #tpu.memory_space<vmem>>, vector<28x16xf32>
    %40 = tpu.concatenate %37, %38, %39 in 0 : vector<28x16xf32>, vector<28x16xf32>, vector<28x16xf32> -> vector<84x16xf32>
    %c0_43 = arith.constant 0 : index
    %c0_44 = arith.constant 0 : index
    %41 = vector.load %arg4[%c0_43, %c0_44] : memref<8x84xbf16, #tpu.memory_space<vmem>>, vector<8x84xbf16>
    %42 = arith.truncf %40 : vector<84x16xf32> to vector<84x16xbf16>
    %cst_45 = arith.constant dense<0.000000e+00> : vector<8x16xf32>
    %43 = tpu.matmul %41, %42, %cst_45 {dimension_numbers = #tpu.dot_dimension_numbers<[1], [0], [0], [1], [0, 0, 1, 1], [], []>} : vector<8x84xbf16>, vector<84x16xbf16>, vector<8x16xf32> -> vector<8x16xf32>
    %44 = arith.addf %43, %13 : vector<8x16xf32>
    %cst_46 = arith.constant 0.000000e+00 : f32
    %45 = vector.broadcast %cst_46 : f32 to vector<8x16xf32>
    %46 = arith.maximumf %44, %45 : vector<8x16xf32>
    %c0_47 = arith.constant 0 : index
    %c2_48 = arith.constant 2 : index
    %47 = vector.load %arg12[%c0_47, %c2_48] : memref<32x20xf32, #tpu.memory_space<vmem>>, vector<8x16xf32>
    tpu.vector_store %arg12[%c0_47, %c2_48], %46 {strides = array<i32>} : memref<32x20xf32, #tpu.memory_space<vmem>>, vector<8x16xf32>,
    %c0_49 = arith.constant 0 : index
    %c0_50 = arith.constant 0 : index
    %48 = vector.load %arg12[%c0_49, %c0_50] : memref<32x20xf32, #tpu.memory_space<vmem>>, vector<8x16xf32>
    %c0_51 = arith.constant 0 : index
    %c1_52 = arith.constant 1 : index
    %49 = vector.load %arg12[%c0_51, %c1_52] : memref<32x20xf32, #tpu.memory_space<vmem>>, vector<8x16xf32>
    %c0_53 = arith.constant 0 : index
    %c2_54 = arith.constant 2 : index
    %50 = vector.load %arg12[%c0_53, %c2_54] : memref<32x20xf32, #tpu.memory_space<vmem>>, vector<8x16xf32>
    %c0_55 = arith.constant 0 : index
    %c3_56 = arith.constant 3 : index
    %51 = vector.load %arg12[%c0_55, %c3_56] : memref<32x20xf32, #tpu.memory_space<vmem>>, vector<8x16xf32>
    %c0_57 = arith.constant 0 : index
    %c4_58 = arith.constant 4 : index
    %52 = vector.load %arg12[%c0_57, %c4_58] : memref<32x20xf32, #tpu.memory_space<vmem>>, vector<8x16xf32>
    %53 = tpu.concatenate %48, %49, %50, %51, %52 in 0 : vector<8x16xf32>, vector<8x16xf32>, vector<8x16xf32>, vector<8x16xf32>, vector<8x16xf32> -> vector<40x16xf32>
    %c0_59 = arith.constant 0 : index
    %c0_60 = arith.constant 0 : index
    %54 = vector.load %arg6[%c0_59, %c0_60] : memref<24x40xbf16, #tpu.memory_space<vmem>>, vector<24x40xbf16>
    %55 = arith.truncf %53 : vector<40x16xf32> to vector<40x16xbf16>
    %cst_61 = arith.constant dense<0.000000e+00> : vector<24x16xf32>
    %56 = tpu.matmul %54, %55, %cst_61 {dimension_numbers = #tpu.dot_dimension_numbers<[1], [0], [0], [1], [0, 0, 1, 1], [], []>} : vector<24x40xbf16>, vector<40x16xbf16>, vector<24x16xf32> -> vector<24x16xf32>
    %57 = arith.addf %56, %16 : vector<24x16xf32>
    %cst_62 = arith.constant 0.000000e+00 : f32
    %58 = vector.broadcast %cst_62 : f32 to vector<24x16xf32>
    %59 = arith.maximumf %57, %58 : vector<24x16xf32>
    %c8 = arith.constant 8 : index
    %c2_63 = arith.constant 2 : index
    %60 = vector.load %arg12[%c8, %c2_63] : memref<32x20xf32, #tpu.memory_space<vmem>>, vector<24x16xf32>
    tpu.vector_store %arg12[%c8, %c2_63], %59 {strides = array<i32>} : memref<32x20xf32, #tpu.memory_space<vmem>>, vector<24x16xf32>,
    %c0_64 = arith.constant 0 : index
    %c1_65 = arith.constant 1 : index
    %61 = vector.load %arg12[%c0_64, %c1_65] : memref<32x20xf32, #tpu.memory_space<vmem>>, vector<32x16xf32>
    %c0_66 = arith.constant 0 : index
    %c2_67 = arith.constant 2 : index
    %62 = vector.load %arg12[%c0_66, %c2_67] : memref<32x20xf32, #tpu.memory_space<vmem>>, vector<32x16xf32>
    %c0_68 = arith.constant 0 : index
    %c3_69 = arith.constant 3 : index
    %63 = vector.load %arg12[%c0_68, %c3_69] : memref<32x20xf32, #tpu.memory_space<vmem>>, vector<32x16xf32>
    %64 = tpu.concatenate %61, %62, %63 in 0 : vector<32x16xf32>, vector<32x16xf32>, vector<32x16xf32> -> vector<96x16xf32>
    %c0_70 = arith.constant 0 : index
    %c0_71 = arith.constant 0 : index
    %65 = vector.load %arg8[%c0_70, %c0_71] : memref<8x96xbf16, #tpu.memory_space<vmem>>, vector<8x96xbf16>
    %66 = arith.truncf %64 : vector<96x16xf32> to vector<96x16xbf16>
    %cst_72 = arith.constant dense<0.000000e+00> : vector<8x16xf32>
    %67 = tpu.matmul %65, %66, %cst_72 {dimension_numbers = #tpu.dot_dimension_numbers<[1], [0], [0], [1], [0, 0, 1, 1], [], []>} : vector<8x96xbf16>, vector<96x16xbf16>, vector<8x16xf32> -> vector<8x16xf32>
    %68 = arith.addf %67, %19 : vector<8x16xf32>
    %cst_73 = arith.constant 0.000000e+00 : f32
    %69 = vector.broadcast %cst_73 : f32 to vector<8x16xf32>
    %70 = arith.maximumf %68, %69 : vector<8x16xf32>
    %c0_74 = arith.constant 0 : index
    %c0_75 = arith.constant 0 : index
    %c0_76 = arith.constant 0 : index
    %71 = vector.load %arg0[%c0_74, %c0_75, %c0_76] : memref<2x4x16xf32, #tpu.memory_space<vmem>>, vector<1x4x16xf32>
    %72 = vector.shape_cast %71 : vector<1x4x16xf32> to vector<4x16xf32>
    %73 = tpu.concatenate %72, %70 in 0 : vector<4x16xf32>, vector<8x16xf32> -> vector<12x16xf32>
    %74 = vector.extract_strided_slice %20 {offsets = [0, 0, 0], sizes = [1, 16, 8], strides = [1, 1, 1]} : vector<2x16x8xf32> to vector<1x16x8xf32>
    %75 = vector.shape_cast %74 : vector<1x16x8xf32> to vector<16x8xf32>
    %cst_77 = arith.constant dense<0.000000e+00> : vector<12x8xf32>
    %76 = tpu.matmul %73, %75, %cst_77 {dimension_numbers = #tpu.dot_dimension_numbers<[1], [0], [0], [1], [0, 0, 1, 1], [], []>} : vector<12x16xf32>, vector<16x8xf32>, vector<12x8xf32> -> vector<12x8xf32>
    %77 = vector.extract_strided_slice %20 {offsets = [1, 0, 0], sizes = [1, 16, 8], strides = [1, 1, 1]} : vector<2x16x8xf32> to vector<1x16x8xf32>
    %78 = vector.shape_cast %77 : vector<1x16x8xf32> to vector<16x8xf32>
    %cst_78 = arith.constant dense<0.000000e+00> : vector<12x8xf32>
    %79 = tpu.matmul %73, %78, %cst_78 {dimension_numbers = #tpu.dot_dimension_numbers<[1], [0], [0], [1], [0, 0, 1, 1], [], []>} : vector<12x16xf32>, vector<16x8xf32>, vector<12x8xf32> -> vector<12x8xf32>
    %80 = arith.maximumf %76, %79 : vector<12x8xf32>
    %c0_79 = arith.constant 0 : index
    %c0_80 = arith.constant 0 : index
    %c0_81 = arith.constant 0 : index
    %81 = vector.load %arg10[%c0_79, %c0_80, %c0_81] : memref<2x12x8xf32, #tpu.memory_space<vmem>>, vector<1x12x8xf32>
    %82 = vector.shape_cast %81 : vector<1x12x8xf32> to vector<12x8xf32>
    %83 = vector.shape_cast %80 : vector<12x8xf32> to vector<1x12x8xf32>
    tpu.vector_store %arg10[%c0_79, %c0_80, %c0_81], %83 {strides = array<i32>} : memref<2x12x8xf32, #tpu.memory_space<vmem>>, vector<1x12x8xf32>,
    %c1_82 = arith.constant 1 : index
    %c0_83 = arith.constant 0 : index
    %c0_84 = arith.constant 0 : index
    %84 = vector.load %arg0[%c1_82, %c0_83, %c0_84] : memref<2x4x16xf32, #tpu.memory_space<vmem>>, vector<1x4x16xf32>
    %85 = vector.shape_cast %84 : vector<1x4x16xf32> to vector<4x16xf32>
    %c0_85 = arith.constant 0 : index
    %c2_86 = arith.constant 2 : index
    %86 = vector.load %arg11[%c0_85, %c2_86] : memref<28x20xf32, #tpu.memory_space<vmem>>, vector<4x16xf32>
    tpu.vector_store %arg11[%c0_85, %c2_86], %85 {strides = array<i32>} : memref<28x20xf32, #tpu.memory_space<vmem>>, vector<4x16xf32>,
    %c0_87 = arith.constant 0 : index
    %c0_88 = arith.constant 0 : index
    %87 = vector.load %arg11[%c0_87, %c0_88] : memref<28x20xf32, #tpu.memory_space<vmem>>, vector<4x16xf32>
    %c0_89 = arith.constant 0 : index
    %c1_90 = arith.constant 1 : index
    %88 = vector.load %arg11[%c0_89, %c1_90] : memref<28x20xf32, #tpu.memory_space<vmem>>, vector<4x16xf32>
    %c0_91 = arith.constant 0 : index
    %c2_92 = arith.constant 2 : index
    %89 = vector.load %arg11[%c0_91, %c2_92] : memref<28x20xf32, #tpu.memory_space<vmem>>, vector<4x16xf32>
    %c0_93 = arith.constant 0 : index
    %c3_94 = arith.constant 3 : index
    %90 = vector.load %arg11[%c0_93, %c3_94] : memref<28x20xf32, #tpu.memory_space<vmem>>, vector<4x16xf32>
    %c0_95 = arith.constant 0 : index
    %c4_96 = arith.constant 4 : index
    %91 = vector.load %arg11[%c0_95, %c4_96] : memref<28x20xf32, #tpu.memory_space<vmem>>, vector<4x16xf32>
    %92 = tpu.concatenate %87, %88, %89, %90, %91 in 0 : vector<4x16xf32>, vector<4x16xf32>, vector<4x16xf32>, vector<4x16xf32>, vector<4x16xf32> -> vector<20x16xf32>
    %c0_97 = arith.constant 0 : index
    %c0_98 = arith.constant 0 : index
    %93 = vector.load %arg2[%c0_97, %c0_98] : memref<24x20xbf16, #tpu.memory_space<vmem>>, vector<24x20xbf16>
    %94 = arith.truncf %92 : vector<20x16xf32> to vector<20x16xbf16>
    %cst_99 = arith.constant dense<0.000000e+00> : vector<24x16xf32>
    %95 = tpu.matmul %93, %94, %cst_99 {dimension_numbers = #tpu.dot_dimension_numbers<[1], [0], [0], [1], [0, 0, 1, 1], [], []>} : vector<24x20xbf16>, vector<20x16xbf16>, vector<24x16xf32> -> vector<24x16xf32>
    %96 = arith.addf %95, %10 : vector<24x16xf32>
    %cst_100 = arith.constant 0.000000e+00 : f32
    %97 = vector.broadcast %cst_100 : f32 to vector<24x16xf32>
    %98 = arith.maximumf %96, %97 : vector<24x16xf32>
    %c4_101 = arith.constant 4 : index
    %c2_102 = arith.constant 2 : index
    %99 = vector.load %arg11[%c4_101, %c2_102] : memref<28x20xf32, #tpu.memory_space<vmem>>, vector<24x16xf32>
    tpu.vector_store %arg11[%c4_101, %c2_102], %98 {strides = array<i32>} : memref<28x20xf32, #tpu.memory_space<vmem>>, vector<24x16xf32>,
    %c0_103 = arith.constant 0 : index
    %c1_104 = arith.constant 1 : index
    %100 = vector.load %arg11[%c0_103, %c1_104] : memref<28x20xf32, #tpu.memory_space<vmem>>, vector<28x16xf32>
    %c0_105 = arith.constant 0 : index
    %c2_106 = arith.constant 2 : index
    %101 = vector.load %arg11[%c0_105, %c2_106] : memref<28x20xf32, #tpu.memory_space<vmem>>, vector<28x16xf32>
    %c0_107 = arith.constant 0 : index
    %c3_108 = arith.constant 3 : index
    %102 = vector.load %arg11[%c0_107, %c3_108] : memref<28x20xf32, #tpu.memory_space<vmem>>, vector<28x16xf32>
    %103 = tpu.concatenate %100, %101, %102 in 0 : vector<28x16xf32>, vector<28x16xf32>, vector<28x16xf32> -> vector<84x16xf32>
    %c0_109 = arith.constant 0 : index
    %c0_110 = arith.constant 0 : index
    %104 = vector.load %arg4[%c0_109, %c0_110] : memref<8x84xbf16, #tpu.memory_space<vmem>>, vector<8x84xbf16>
    %105 = arith.truncf %103 : vector<84x16xf32> to vector<84x16xbf16>
    %cst_111 = arith.constant dense<0.000000e+00> : vector<8x16xf32>
    %106 = tpu.matmul %104, %105, %cst_111 {dimension_numbers = #tpu.dot_dimension_numbers<[1], [0], [0], [1], [0, 0, 1, 1], [], []>} : vector<8x84xbf16>, vector<84x16xbf16>, vector<8x16xf32> -> vector<8x16xf32>
    %107 = arith.addf %106, %13 : vector<8x16xf32>
    %cst_112 = arith.constant 0.000000e+00 : f32
    %108 = vector.broadcast %cst_112 : f32 to vector<8x16xf32>
    %109 = arith.maximumf %107, %108 : vector<8x16xf32>
    %c0_113 = arith.constant 0 : index
    %c2_114 = arith.constant 2 : index
    %110 = vector.load %arg12[%c0_113, %c2_114] : memref<32x20xf32, #tpu.memory_space<vmem>>, vector<8x16xf32>
    tpu.vector_store %arg12[%c0_113, %c2_114], %109 {strides = array<i32>} : memref<32x20xf32, #tpu.memory_space<vmem>>, vector<8x16xf32>,
    %c0_115 = arith.constant 0 : index
    %c0_116 = arith.constant 0 : index
    %111 = vector.load %arg12[%c0_115, %c0_116] : memref<32x20xf32, #tpu.memory_space<vmem>>, vector<8x16xf32>
    %c0_117 = arith.constant 0 : index
    %c1_118 = arith.constant 1 : index
    %112 = vector.load %arg12[%c0_117, %c1_118] : memref<32x20xf32, #tpu.memory_space<vmem>>, vector<8x16xf32>
    %c0_119 = arith.constant 0 : index
    %c2_120 = arith.constant 2 : index
    %113 = vector.load %arg12[%c0_119, %c2_120] : memref<32x20xf32, #tpu.memory_space<vmem>>, vector<8x16xf32>
    %c0_121 = arith.constant 0 : index
    %c3_122 = arith.constant 3 : index
    %114 = vector.load %arg12[%c0_121, %c3_122] : memref<32x20xf32, #tpu.memory_space<vmem>>, vector<8x16xf32>
    %c0_123 = arith.constant 0 : index
    %c4_124 = arith.constant 4 : index
    %115 = vector.load %arg12[%c0_123, %c4_124] : memref<32x20xf32, #tpu.memory_space<vmem>>, vector<8x16xf32>
    %116 = tpu.concatenate %111, %112, %113, %114, %115 in 0 : vector<8x16xf32>, vector<8x16xf32>, vector<8x16xf32>, vector<8x16xf32>, vector<8x16xf32> -> vector<40x16xf32>
    %c0_125 = arith.constant 0 : index
    %c0_126 = arith.constant 0 : index
    %117 = vector.load %arg6[%c0_125, %c0_126] : memref<24x40xbf16, #tpu.memory_space<vmem>>, vector<24x40xbf16>
    %118 = arith.truncf %116 : vector<40x16xf32> to vector<40x16xbf16>
    %cst_127 = arith.constant dense<0.000000e+00> : vector<24x16xf32>
    %119 = tpu.matmul %117, %118, %cst_127 {dimension_numbers = #tpu.dot_dimension_numbers<[1], [0], [0], [1], [0, 0, 1, 1], [], []>} : vector<24x40xbf16>, vector<40x16xbf16>, vector<24x16xf32> -> vector<24x16xf32>
    %120 = arith.addf %119, %16 : vector<24x16xf32>
    %cst_128 = arith.constant 0.000000e+00 : f32
    %121 = vector.broadcast %cst_128 : f32 to vector<24x16xf32>
    %122 = arith.maximumf %120, %121 : vector<24x16xf32>
    %c8_129 = arith.constant 8 : index
    %c2_130 = arith.constant 2 : index
    %123 = vector.load %arg12[%c8_129, %c2_130] : memref<32x20xf32, #tpu.memory_space<vmem>>, vector<24x16xf32>
    tpu.vector_store %arg12[%c8_129, %c2_130], %122 {strides = array<i32>} : memref<32x20xf32, #tpu.memory_space<vmem>>, vector<24x16xf32>,
    %c0_131 = arith.constant 0 : index
    %c1_132 = arith.constant 1 : index
    %124 = vector.load %arg12[%c0_131, %c1_132] : memref<32x20xf32, #tpu.memory_space<vmem>>, vector<32x16xf32>
    %c0_133 = arith.constant 0 : index
    %c2_134 = arith.constant 2 : index
    %125 = vector.load %arg12[%c0_133, %c2_134] : memref<32x20xf32, #tpu.memory_space<vmem>>, vector<32x16xf32>
    %c0_135 = arith.constant 0 : index
    %c3_136 = arith.constant 3 : index
    %126 = vector.load %arg12[%c0_135, %c3_136] : memref<32x20xf32, #tpu.memory_space<vmem>>, vector<32x16xf32>
    %127 = tpu.concatenate %124, %125, %126 in 0 : vector<32x16xf32>, vector<32x16xf32>, vector<32x16xf32> -> vector<96x16xf32>
    %c0_137 = arith.constant 0 : index
    %c0_138 = arith.constant 0 : index
    %128 = vector.load %arg8[%c0_137, %c0_138] : memref<8x96xbf16, #tpu.memory_space<vmem>>, vector<8x96xbf16>
    %129 = arith.truncf %127 : vector<96x16xf32> to vector<96x16xbf16>
    %cst_139 = arith.constant dense<0.000000e+00> : vector<8x16xf32>
    %130 = tpu.matmul %128, %129, %cst_139 {dimension_numbers = #tpu.dot_dimension_numbers<[1], [0], [0], [1], [0, 0, 1, 1], [], []>} : vector<8x96xbf16>, vector<96x16xbf16>, vector<8x16xf32> -> vector<8x16xf32>
    %131 = arith.addf %130, %19 : vector<8x16xf32>
    %cst_140 = arith.constant 0.000000e+00 : f32
    %132 = vector.broadcast %cst_140 : f32 to vector<8x16xf32>
    %133 = arith.maximumf %131, %132 : vector<8x16xf32>
    %c1_141 = arith.constant 1 : index
    %c0_142 = arith.constant 0 : index
    %c0_143 = arith.constant 0 : index
    %134 = vector.load %arg0[%c1_141, %c0_142, %c0_143] : memref<2x4x16xf32, #tpu.memory_space<vmem>>, vector<1x4x16xf32>
    %135 = vector.shape_cast %134 : vector<1x4x16xf32> to vector<4x16xf32>
    %136 = tpu.concatenate %135, %133 in 0 : vector<4x16xf32>, vector<8x16xf32> -> vector<12x16xf32>
    %137 = vector.extract_strided_slice %20 {offsets = [0, 0, 0], sizes = [1, 16, 8], strides = [1, 1, 1]} : vector<2x16x8xf32> to vector<1x16x8xf32>
    %138 = vector.shape_cast %137 : vector<1x16x8xf32> to vector<16x8xf32>
    %cst_144 = arith.constant dense<0.000000e+00> : vector<12x8xf32>
    %139 = tpu.matmul %136, %138, %cst_144 {dimension_numbers = #tpu.dot_dimension_numbers<[1], [0], [0], [1], [0, 0, 1, 1], [], []>} : vector<12x16xf32>, vector<16x8xf32>, vector<12x8xf32> -> vector<12x8xf32>
    %140 = vector.extract_strided_slice %20 {offsets = [1, 0, 0], sizes = [1, 16, 8], strides = [1, 1, 1]} : vector<2x16x8xf32> to vector<1x16x8xf32>
    %141 = vector.shape_cast %140 : vector<1x16x8xf32> to vector<16x8xf32>
    %cst_145 = arith.constant dense<0.000000e+00> : vector<12x8xf32>
    %142 = tpu.matmul %136, %141, %cst_145 {dimension_numbers = #tpu.dot_dimension_numbers<[1], [0], [0], [1], [0, 0, 1, 1], [], []>} : vector<12x16xf32>, vector<16x8xf32>, vector<12x8xf32> -> vector<12x8xf32>
    %143 = arith.maximumf %139, %142 : vector<12x8xf32>
    %c1_146 = arith.constant 1 : index
    %c0_147 = arith.constant 0 : index
    %c0_148 = arith.constant 0 : index
    %144 = vector.load %arg10[%c1_146, %c0_147, %c0_148] : memref<2x12x8xf32, #tpu.memory_space<vmem>>, vector<1x12x8xf32>
    %145 = vector.shape_cast %144 : vector<1x12x8xf32> to vector<12x8xf32>
    %146 = vector.shape_cast %143 : vector<12x8xf32> to vector<1x12x8xf32>
    tpu.vector_store %arg10[%c1_146, %c0_147, %c0_148], %146 {strides = array<i32>} : memref<2x12x8xf32, #tpu.memory_space<vmem>>, vector<1x12x8xf32>,
    return
  }
}

</mosaic_0001>

<llo_original>
// kernel: basic_block_fused.1
$region0: #{basic_block_fused.1}
  #allocation0 [shape = 'u32[]', space=smem, size = 0x4, offset = 0x4, fixed_abs, tag = 'smem constant byte address 0x4 - core index']
  #allocation1 [shape = 'u32[144,128]{1,0:T(1,128)}', space=vmem, size = 0x12000, scoped, tag = 'internal scratch']
  #allocation2 [shape = 'f32[28,20]{1,0:T(8,128)}', space=vmem, size = 0x4000, scoped, tag = 'scratch operand']
  #allocation3 [shape = 'f32[32,20]{1,0:T(8,128)}', space=vmem, size = 0x4000, scoped, tag = 'scratch operand']
  %s0 = inlined_call_operand.vmem [shape: f32[2,4,16], index: 0, kind: input, shape index: {}]
  %s1 = inlined_call_operand.vmem [shape: f32[2,16,8], index: 1, kind: input, shape index: {}]
  %s2 = inlined_call_operand.vmem [shape: bf16[24,20], index: 2, kind: input, shape index: {}]
  %s3 = inlined_call_operand.vmem [shape: f32[24,1], index: 3, kind: input, shape index: {}]
  %s4 = inlined_call_operand.vmem [shape: bf16[8,84], index: 4, kind: input, shape index: {}]
  %s5 = inlined_call_operand.vmem [shape: f32[8,1], index: 5, kind: input, shape index: {}]
  %s6 = inlined_call_operand.vmem [shape: bf16[24,40], index: 6, kind: input, shape index: {}]
  %s7 = inlined_call_operand.vmem [shape: f32[24,1], index: 7, kind: input, shape index: {}]
  %s8 = inlined_call_operand.vmem [shape: bf16[8,96], index: 8, kind: input, shape index: {}]
  %s9 = inlined_call_operand.vmem [shape: f32[8,1], index: 9, kind: input, shape index: {}]
  %s10 = inlined_call_operand.vmem [shape: f32[2,12,8], index: 10, kind: output, shape index: {}]
  %s11 = sld [smem:[#allocation0]]
  $region50: #{basic_block_fused.1} parent=0
    _
  %s13 = ssub.s32 1, %s11
  %s14 = scalar_select 0, %s13, %s11
  // Predicated region
  $region2: #{basic_block_fused.1} parent=0 // pred_check
    _
  $region3: #{basic_block_fused.1} parent=0 // pred_check_branch
    %16 = sbr.rel (0) target = $region5
  $region4: #{basic_block_fused.1} parent=0 // pred_region
    _
  $region5: #{basic_block_fused.1} parent=0 // pred_fallthru
    _
  // Predicated region
  $region6: #{basic_block_fused.1} parent=0 // pred_check
    _
  $region7: #{basic_block_fused.1} parent=0 // pred_check_branch
    %18 = sbr.rel (0) target = $region9
  $region8: #{basic_block_fused.1} parent=0 // pred_region
    _
  $region9: #{basic_block_fused.1} parent=0 // pred_fallthru
    _
  // Predicated region
  $region10: #{basic_block_fused.1} parent=0 // pred_check
    _
  $region11: #{basic_block_fused.1} parent=0 // pred_check_branch
    %20 = sbr.rel (0) target = $region13
  $region12: #{basic_block_fused.1} parent=0 // pred_region
    _
  $region13: #{basic_block_fused.1} parent=0 // pred_fallthru
    _
  // Predicated region
  $region14: #{basic_block_fused.1} parent=0 // pred_check
    _
  $region15: #{basic_block_fused.1} parent=0 // pred_check_branch
    %22 = sbr.rel (0) target = $region17
  $region16: #{basic_block_fused.1} parent=0 // pred_region
    _
  $region17: #{basic_block_fused.1} parent=0 // pred_fallthru
    _
  // Predicated region
  $region18: #{basic_block_fused.1} parent=0 // pred_check
    _
  $region19: #{basic_block_fused.1} parent=0 // pred_check_branch
    %24 = sbr.rel (0) target = $region21
  $region20: #{basic_block_fused.1} parent=0 // pred_region
    _
  $region21: #{basic_block_fused.1} parent=0 // pred_fallthru
    _
  // Predicated region
  $region22: #{basic_block_fused.1} parent=0 // pred_check
    _
  $region23: #{basic_block_fused.1} parent=0 // pred_check_branch
    %26 = sbr.rel (0) target = $region25
  $region24: #{basic_block_fused.1} parent=0 // pred_region
    _
  $region25: #{basic_block_fused.1} parent=0 // pred_fallthru
    _
  // Predicated region
  $region26: #{basic_block_fused.1} parent=0 // pred_check
    _
  $region27: #{basic_block_fused.1} parent=0 // pred_check_branch
    %28 = sbr.rel (0) target = $region29
  $region28: #{basic_block_fused.1} parent=0 // pred_region
    _
  $region29: #{basic_block_fused.1} parent=0 // pred_fallthru
    _
  // Predicated region
  $region30: #{basic_block_fused.1} parent=0 // pred_check
    _
  $region31: #{basic_block_fused.1} parent=0 // pred_check_branch
    %30 = sbr.rel (0) target = $region33
  $region32: #{basic_block_fused.1} parent=0 // pred_region
    _
  $region33: #{basic_block_fused.1} parent=0 // pred_fallthru
    _
  // Predicated region
  $region34: #{basic_block_fused.1} parent=0 // pred_check
    _
  $region35: #{basic_block_fused.1} parent=0 // pred_check_branch
    %32 = sbr.rel (0) target = $region37
  $region36: #{basic_block_fused.1} parent=0 // pred_region
    _
  $region37: #{basic_block_fused.1} parent=0 // pred_fallthru
    _
  // Predicated region
  $region38: #{basic_block_fused.1} parent=0 // pred_check
    _
  $region39: #{basic_block_fused.1} parent=0 // pred_check_branch
    %34 = sbr.rel (0) target = $region41
  $region40: #{basic_block_fused.1} parent=0 // pred_region
    _
  $region41: #{basic_block_fused.1} parent=0 // pred_fallthru
    _
  %vm36 = vcmask 15360
  %37 = vst.msk [vmem:[#allocation2] sm:$0xff] %vm36, 0.0
  %38 = vst.msk [vmem:[#allocation2 + $0x8] sm:$0xff] %vm36, 0.0
  %39 = vst.msk [vmem:[#allocation2 + $0x10] sm:$0xff] %vm36, 0.0
  %vm40 = vcmask 11264
  %41 = vst.msk [vmem:[#allocation2 + $0x18] sm:$0xf] %vm40, 0.0
  %vm42 = vcmask 162960
  %43 = vst.msk [vmem:[#allocation2] sm:$0xff] %vm42, 0.0
  %44 = vst.msk [vmem:[#allocation2 + $0x8] sm:$0xff] %vm42, 0.0
  %45 = vst.msk [vmem:[#allocation2 + $0x10] sm:$0xff] %vm42, 0.0
  %vm46 = vcmask 158864
  %47 = vst.msk [vmem:[#allocation2 + $0x18] sm:$0xf] %vm46, 0.0
  %48 = vst.msk [vmem:[#allocation3] sm:$0xff] %vm36, 0.0
  %49 = vst.msk [vmem:[#allocation3 + $0x8] sm:$0xff] %vm36, 0.0
  %50 = vst.msk [vmem:[#allocation3 + $0x10] sm:$0xff] %vm36, 0.0
  %51 = vst.msk [vmem:[#allocation3 + $0x18] sm:$0xff] %vm36, 0.0
  %52 = vst.msk [vmem:[#allocation3] sm:$0xff] %vm42, 0.0
  %53 = vst.msk [vmem:[#allocation3 + $0x8] sm:$0xff] %vm42, 0.0
  %54 = vst.msk [vmem:[#allocation3 + $0x10] sm:$0xff] %vm42, 0.0
  %55 = vst.msk [vmem:[#allocation3 + $0x18] sm:$0xff] %vm42, 0.0
  %v56 = vld [vmem:[%s3] sm:$0xff]
  %v57 = vld [vmem:[%s3 + $0x8] sm:$0xff]
  %v58 = vld [vmem:[%s3 + $0x10] sm:$0xff]
  %60 = vset.pattern.permute.xlu0 0
  %61 = vperm.xlu0 %60, %v56
  %v62 = vpop.permute.xlu0 %61
  %65 = vset.pattern.permute.xlu0 0
  %66 = vperm.xlu0 %65, %v57
  %v67 = vpop.permute.xlu0 %66
  %70 = vset.pattern.permute.xlu0 0
  %71 = vperm.xlu0 %70, %v58
  %v72 = vpop.permute.xlu0 %71
  %v74 = vld [vmem:[%s5] sm:$0xff]
  %76 = vset.pattern.permute.xlu0 0
  %77 = vperm.xlu0 %76, %v74
  %v78 = vpop.permute.xlu0 %77
  %v80 = vld [vmem:[%s7] sm:$0xff]
  %v81 = vld [vmem:[%s7 + $0x8] sm:$0xff]
  %v82 = vld [vmem:[%s7 + $0x10] sm:$0xff]
  %84 = vset.pattern.permute.xlu0 0
  %85 = vperm.xlu0 %84, %v80
  %v86 = vpop.permute.xlu0 %85
  %89 = vset.pattern.permute.xlu0 0
  %90 = vperm.xlu0 %89, %v81
  %v91 = vpop.permute.xlu0 %90
  %94 = vset.pattern.permute.xlu0 0
  %95 = vperm.xlu0 %94, %v82
  %v96 = vpop.permute.xlu0 %95
  %v98 = vld [vmem:[%s9] sm:$0xff]
  %100 = vset.pattern.permute.xlu0 0
  %101 = vperm.xlu0 %100, %v98
  %v102 = vpop.permute.xlu0 %101
  %v104 = vld [vmem:[%s1] sm:$0xff]
  %v105 = vld [vmem:[%s1 + $0x8] sm:$0xff]
  %v106 = vld [vmem:[%s1 + $0x10] sm:$0xff]
  %v107 = vld [vmem:[%s1 + $0x18] sm:$0xff]
  %v108 = vld [vmem:[%s0] sm:$0xf]
  %110 = vrot.lane.b32.xlu0 %v108, 2
  %v111 = vpop.permute.xlu0 %110
  %vm113 = vcmask 142352
  %114 = vst.msk [vmem:[#allocation2] sm:$0xf] %vm113, %v111
  %v115 = vld [vmem:[#allocation2] sm:$0xf]
  %v117 = vrot.slane %v115, 4
  %118 = vrot.lane.b32.xlu0 %v117, 127
  %v119 = vpop.permute.xlu0 %118
  %121 = vrot.lane.b32.xlu0 %v115, 126
  %v122 = vpop.permute.xlu0 %121
  %124 = vrot.lane.b32.xlu0 %v117, 125
  %v125 = vpop.permute.xlu0 %124
  %127 = vrot.lane.b32.xlu0 %v115, 124
  %v128 = vpop.permute.xlu0 %127
  %vm130 = vcmask 1043456
  %v131 = vsel %vm130, %v115, %v119
  %v132 = vsel %vm130, %v122, %v125
  %v133 = vld [vmem:[%s2] sm:$0xf]
  %v134 = vld [vmem:[%s2 + $0x4] sm:$0xf]
  %v135 = vld [vmem:[%s2 + $0x8] sm:$0xf]
  %v136 = vpack.c.bf16 %v132, %v131
  %v137 = vpack.c.bf16 %v128, %v128
  %v141 = vunpack.c.l.b16 %v133
  %v142 = vunpack.c.l.b16 %v134
  %v143 = vunpack.c.l.b16 %v135
  %v144 = vpack.c.b16 %v142, %v141
  %v145 = vpack.c.b16 %v143, %v143
  %vm146 = vcmask 162816
  %v148 = vsel %vm146, %v144, 0
  %v151 = vsel %vm146, %v145, 0
  %vm153 = vcmask 1041408
  %v155 = vsel %vm153, %v137, 0
  %157 = vmatprep.subr.bf16.mxu0 0
  %158 = vmatpush1.bf16.msra.mxu0 0
  %159 = vmatprep.subr.bf16.mxu0 0
  %160 = vmatpush1.bf16.msra.mxu0 0
  %161 = vmatprep.subr.bf16.mxu0 0
  %162 = vmatpush1.bf16.msra.mxu0 0
  %163 = vmatprep.subr.bf16.mxu0 0
  %164 = vmatpush1.bf16.msra.mxu0 0
  %165 = vmatprep.subr.bf16.mxu0 0
  %166 = vmatpush1.bf16.msra.mxu0 0
  %167 = vmatprep.subr.bf16.mxu0 0
  %168 = vmatpush1.bf16.msra.mxu0 0
  %169 = vmatprep.subr.bf16.mxu0 0
  %170 = vmatpush1.bf16.msra.mxu0 %v155
  %171 = vmatprep.subr.bf16.mxu0 0
  %172 = vmatpush1.bf16.msra.mxu0 %v136
  %173 = vmatprep.subr.bf16.mxu0 0
  %174 = vmatpush2.bf16.msra.mxu0 0
  %175 = vmatprep.subr.bf16.mxu0 0
  %176 = vmatpush2.bf16.msra.mxu0 0
  %177 = vmatprep.subr.bf16.mxu0 0
  %178 = vmatpush2.bf16.msra.mxu0 0
  %179 = vmatprep.subr.bf16.mxu0 0
  %180 = vmatpush2.bf16.msra.mxu0 0
  %181 = vmatprep.subr.bf16.mxu0 0
  %182 = vmatpush2.bf16.msra.mxu0 0
  %183 = vmatprep.subr.bf16.mxu0 0
  %184 = vmatpush2.bf16.msra.mxu0 0
  %185 = vmatprep.subr.bf16.mxu0 0
  %186 = vmatpush2.bf16.msra.mxu0 0
  %187 = vmatprep.subr.bf16.mxu0 0
  %188 = vmatpush2.bf16.msra.mxu0 0
  %189 = vmatprep.mubr.bf16.mxu0 0
  %190 = vmatmul.mubr.bf16.gmra.mxu0 %v148
  %v191 = vpop.f32.mrf.mxu0
  %v192 = vadd.f32 %v62, %v191
  %v193 = vpop.f32.mrf.mxu0
  %v194 = vpop.f32.mrf.mxu0
  %v195 = vadd.f32 %v67, %v194
  %v196 = vpop.f32.mrf.mxu0
  %197 = vmatprep.mubr.bf16.mxu0 0
  %198 = vmatmul.mubr.bf16.gmra.mxu0 %v151
  %v199 = vpop.f32.mrf.mxu0
  %v200 = vadd.f32 %v72, %v199
  %v201 = vpop.f32.mrf.mxu0
  %v202 = vpop.f32.mrf.mxu0
  %v203 = vpop.f32.mrf.mxu0
  %204 = vdwg.mxu0
  %v205 = vmax.f32 %v192, 0.0
  %v206 = vmax.f32 %v195, 0.0
  %v207 = vmax.f32 %v200, 0.0
  %211 = vrot.lane.b32.xlu0 %v205, 2
  %v212 = vpop.permute.xlu0 %211
  %213 = vrot.lane.b32.xlu0 %v206, 2
  %v214 = vpop.permute.xlu0 %213
  %215 = vrot.lane.b32.xlu0 %v207, 2
  %v216 = vpop.permute.xlu0 %215
  %vm220 = vcmask 146448
  %221 = vst.msk [vmem:[#allocation2 + $0x4] sm:$0xff] %vm220, %v212
  %222 = vst.msk [vmem:[#allocation2 + $0xc] sm:$0xff] %vm220, %v214
  %223 = vst.msk [vmem:[#allocation2 + $0x14] sm:$0xff] %vm220, %v216
  %v224 = vld [vmem:[#allocation2] sm:$0xff]
  %v225 = vld [vmem:[#allocation2 + $0x8] sm:$0xff]
  %v226 = vld [vmem:[#allocation2 + $0x10] sm:$0xff]
  %v227 = vld [vmem:[#allocation2 + $0x18] sm:$0xf]
  %v232 = vrot.slane %v224, 4
  %v233 = vrot.slane %v225, 4
  %v234 = vsel %vm130, %v232, %v233
  %v235 = vrot.slane %v226, 4
  %v236 = vsel %vm130, %v233, %v235
  %v237 = vrot.slane %v227, 4
  %v238 = vsel %vm130, %v235, %v237
  %239 = vrot.lane.b32.xlu0 %v232, 127
  %v240 = vpop.permute.xlu0 %239
  %241 = vrot.lane.b32.xlu0 %v234, 127
  %v242 = vpop.permute.xlu0 %241
  %243 = vrot.lane.b32.xlu0 %v236, 127
  %v244 = vpop.permute.xlu0 %243
  %245 = vrot.lane.b32.xlu0 %v238, 127
  %v246 = vpop.permute.xlu0 %245
  %251 = vrot.lane.b32.xlu0 %v224, 126
  %v252 = vpop.permute.xlu0 %251
  %253 = vrot.lane.b32.xlu0 %v225, 126
  %v254 = vpop.permute.xlu0 %253
  %255 = vrot.lane.b32.xlu0 %v226, 126
  %v256 = vpop.permute.xlu0 %255
  %257 = vrot.lane.b32.xlu0 %v227, 126
  %v258 = vpop.permute.xlu0 %257
  %v263 = vsel %vm130, %v227, %v240
  %v264 = vld [vmem:[%s4] sm:$0xf]
  %v265 = vpack.c.bf16 %v225, %v224
  %v266 = vpack.c.bf16 %v263, %v226
  %v267 = vpack.c.bf16 %v244, %v242
  %v268 = vpack.c.bf16 %v252, %v246
  %v269 = vpack.c.bf16 %v256, %v254
  %v270 = vpack.c.bf16 %v258, %v258
  %277 = vrot.lane.b32.xlu0 %v265, 127
  %v278 = vpop.permute.xlu0 %277
  %279 = vrot.lane.b32.xlu0 %v266, 127
  %v280 = vpop.permute.xlu0 %279
  %281 = vrot.lane.b32.xlu0 %v267, 127
  %v282 = vpop.permute.xlu0 %281
  %283 = vrot.lane.b32.xlu0 %v268, 127
  %v284 = vpop.permute.xlu0 %283
  %285 = vrot.lane.b32.xlu0 %v269, 127
  %v286 = vpop.permute.xlu0 %285
  %287 = vrot.lane.b32.xlu0 %v270, 127
  %v288 = vpop.permute.xlu0 %287
  %vm294 = vcmask 687104
  %v296 = vsel %vm294, %v264, 0
  %v299 = vsel %vm153, %v288, 0
  %301 = vmatprep.subr.bf16.mxu0 0
  %302 = vmatpush1.bf16.msra.mxu0 0
  %303 = vmatprep.subr.bf16.mxu0 0
  %304 = vmatpush1.bf16.msra.mxu0 0
  %305 = vmatprep.subr.bf16.mxu0 0
  %306 = vmatpush1.bf16.msra.mxu0 %v299
  %307 = vmatprep.subr.bf16.mxu0 0
  %308 = vmatpush1.bf16.msra.mxu0 %v286
  %309 = vmatprep.subr.bf16.mxu0 0
  %310 = vmatpush1.bf16.msra.mxu0 %v284
  %311 = vmatprep.subr.bf16.mxu0 0
  %312 = vmatpush1.bf16.msra.mxu0 %v282
  %313 = vmatprep.subr.bf16.mxu0 0
  %314 = vmatpush1.bf16.msra.mxu0 %v280
  %315 = vmatprep.subr.bf16.mxu0 0
  %316 = vmatpush1.bf16.msra.mxu0 %v278
  %317 = vmatprep.subr.bf16.mxu0 0
  %318 = vmatpush2.bf16.msra.mxu0 0
  %319 = vmatprep.subr.bf16.mxu0 0
  %320 = vmatpush2.bf16.msra.mxu0 0
  %321 = vmatprep.subr.bf16.mxu0 0
  %322 = vmatpush2.bf16.msra.mxu0 0
  %323 = vmatprep.subr.bf16.mxu0 0
  %324 = vmatpush2.bf16.msra.mxu0 0
  %325 = vmatprep.subr.bf16.mxu0 0
  %326 = vmatpush2.bf16.msra.mxu0 0
  %327 = vmatprep.subr.bf16.mxu0 0
  %328 = vmatpush2.bf16.msra.mxu0 0
  %329 = vmatprep.subr.bf16.mxu0 0
  %330 = vmatpush2.bf16.msra.mxu0 0
  %331 = vmatprep.subr.bf16.mxu0 0
  %332 = vmatpush2.bf16.msra.mxu0 0
  %333 = vmatprep.mubr.bf16.mxu0 0
  %334 = vmatmul.mubr.bf16.gmra.mxu0 %v296
  %v335 = vpop.f32.mrf.mxu0
  %v336 = vadd.f32 %v78, %v335
  %v337 = vpop.f32.mrf.mxu0
  %v338 = vpop.f32.mrf.mxu0
  %v339 = vpop.f32.mrf.mxu0
  %340 = vdwg.mxu0
  %v341 = vmax.f32 %v336, 0.0
  %343 = vrot.lane.b32.xlu0 %v341, 2
  %v344 = vpop.permute.xlu0 %343
  %346 = vst.msk [vmem:[#allocation3] sm:$0xff] %vm220, %v344
  %v347 = vld [vmem:[#allocation3] sm:$0xff]
  %349 = vrot.lane.b32.xlu0 %v347, 127
  %v350 = vpop.permute.xlu0 %349
  %352 = vrot.lane.b32.xlu0 %v347, 126
  %v353 = vpop.permute.xlu0 %352
  %355 = vrot.lane.b32.xlu0 %v347, 125
  %v356 = vpop.permute.xlu0 %355
  %358 = vrot.lane.b32.xlu0 %v347, 124
  %v359 = vpop.permute.xlu0 %358
  %v361 = vld [vmem:[%s6] sm:$0xf]
  %v362 = vld [vmem:[%s6 + $0x4] sm:$0xf]
  %v363 = vld [vmem:[%s6 + $0x8] sm:$0xf]
  %v364 = vpack.c.bf16 %v350, %v347
  %v365 = vpack.c.bf16 %v356, %v353
  %v366 = vpack.c.bf16 %v359, %v359
  %v370 = vunpack.c.l.b16 %v361
  %v371 = vunpack.c.l.b16 %v362
  %v372 = vunpack.c.l.b16 %v363
  %v373 = vpack.c.b16 %v371, %v370
  %v374 = vpack.c.b16 %v372, %v372
  %vm375 = vcmask 326656
  %v377 = vsel %vm375, %v373, 0
  %v380 = vsel %vm375, %v374, 0
  %v383 = vsel %vm130, %v366, 0
  %385 = vmatprep.subr.bf16.mxu0 0
  %386 = vmatpush1.bf16.msra.mxu0 0
  %387 = vmatprep.subr.bf16.mxu0 0
  %388 = vmatpush1.bf16.msra.mxu0 0
  %389 = vmatprep.subr.bf16.mxu0 0
  %390 = vmatpush1.bf16.msra.mxu0 0
  %391 = vmatprep.subr.bf16.mxu0 0
  %392 = vmatpush1.bf16.msra.mxu0 0
  %393 = vmatprep.subr.bf16.mxu0 0
  %394 = vmatpush1.bf16.msra.mxu0 0
  %395 = vmatprep.subr.bf16.mxu0 0
  %396 = vmatpush1.bf16.msra.mxu0 %v383
  %397 = vmatprep.subr.bf16.mxu0 0
  %398 = vmatpush1.bf16.msra.mxu0 %v365
  %399 = vmatprep.subr.bf16.mxu0 0
  %400 = vmatpush1.bf16.msra.mxu0 %v364
  %401 = vmatprep.subr.bf16.mxu0 0
  %402 = vmatpush2.bf16.msra.mxu0 0
  %403 = vmatprep.subr.bf16.mxu0 0
  %404 = vmatpush2.bf16.msra.mxu0 0
  %405 = vmatprep.subr.bf16.mxu0 0
  %406 = vmatpush2.bf16.msra.mxu0 0
  %407 = vmatprep.subr.bf16.mxu0 0
  %408 = vmatpush2.bf16.msra.mxu0 0
  %409 = vmatprep.subr.bf16.mxu0 0
  %410 = vmatpush2.bf16.msra.mxu0 0
  %411 = vmatprep.subr.bf16.mxu0 0
  %412 = vmatpush2.bf16.msra.mxu0 0
  %413 = vmatprep.subr.bf16.mxu0 0
  %414 = vmatpush2.bf16.msra.mxu0 0
  %415 = vmatprep.subr.bf16.mxu0 0
  %416 = vmatpush2.bf16.msra.mxu0 0
  %417 = vmatprep.mubr.bf16.mxu0 0
  %418 = vmatmul.mubr.bf16.gmra.mxu0 %v377
  %v419 = vpop.f32.mrf.mxu0
  %v420 = vadd.f32 %v86, %v419
  %v421 = vpop.f32.mrf.mxu0
  %v422 = vpop.f32.mrf.mxu0
  %v423 = vadd.f32 %v91, %v422
  %v424 = vpop.f32.mrf.mxu0
  %425 = vmatprep.mubr.bf16.mxu0 0
  %426 = vmatmul.mubr.bf16.gmra.mxu0 %v380
  %v427 = vpop.f32.mrf.mxu0
  %v428 = vadd.f32 %v96, %v427
  %v429 = vpop.f32.mrf.mxu0
  %v430 = vpop.f32.mrf.mxu0
  %v431 = vpop.f32.mrf.mxu0
  %432 = vdwg.mxu0
  %v433 = vmax.f32 %v420, 0.0
  %v434 = vmax.f32 %v423, 0.0
  %v435 = vmax.f32 %v428, 0.0
  %439 = vrot.lane.b32.xlu0 %v433, 2
  %v440 = vpop.permute.xlu0 %439
  %441 = vrot.lane.b32.xlu0 %v434, 2
  %v442 = vpop.permute.xlu0 %441
  %443 = vrot.lane.b32.xlu0 %v435, 2
  %v444 = vpop.permute.xlu0 %443
  %448 = vst.msk [vmem:[#allocation3 + $0x8] sm:$0xff] %vm220, %v440
  %449 = vst.msk [vmem:[#allocation3 + $0x10] sm:$0xff] %vm220, %v442
  %450 = vst.msk [vmem:[#allocation3 + $0x18] sm:$0xff] %vm220, %v444
  %v451 = vld [vmem:[#allocation3] sm:$0xff]
  %v452 = vld [vmem:[#allocation3 + $0x8] sm:$0xff]
  %v453 = vld [vmem:[#allocation3 + $0x10] sm:$0xff]
  %v454 = vld [vmem:[#allocation3 + $0x18] sm:$0xff]
  %459 = vrot.lane.b32.xlu0 %v451, 127
  %v460 = vpop.permute.xlu0 %459
  %461 = vrot.lane.b32.xlu0 %v452, 127
  %v462 = vpop.permute.xlu0 %461
  %463 = vrot.lane.b32.xlu0 %v453, 127
  %v464 = vpop.permute.xlu0 %463
  %465 = vrot.lane.b32.xlu0 %v454, 127
  %v466 = vpop.permute.xlu0 %465
  %471 = vrot.lane.b32.xlu0 %v451, 126
  %v472 = vpop.permute.xlu0 %471
  %473 = vrot.lane.b32.xlu0 %v452, 126
  %v474 = vpop.permute.xlu0 %473
  %475 = vrot.lane.b32.xlu0 %v453, 126
  %v476 = vpop.permute.xlu0 %475
  %477 = vrot.lane.b32.xlu0 %v454, 126
  %v478 = vpop.permute.xlu0 %477
  %v483 = vld [vmem:[%s8] sm:$0xf]
  %v484 = vpack.c.bf16 %v452, %v451
  %v485 = vpack.c.bf16 %v454, %v453
  %v486 = vpack.c.bf16 %v462, %v460
  %v487 = vpack.c.bf16 %v466, %v464
  %v488 = vpack.c.bf16 %v474, %v472
  %v489 = vpack.c.bf16 %v478, %v476
  %496 = vrot.lane.b32.xlu0 %v484, 127
  %v497 = vpop.permute.xlu0 %496
  %498 = vrot.lane.b32.xlu0 %v485, 127
  %v499 = vpop.permute.xlu0 %498
  %500 = vrot.lane.b32.xlu0 %v486, 127
  %v501 = vpop.permute.xlu0 %500
  %502 = vrot.lane.b32.xlu0 %v487, 127
  %v503 = vpop.permute.xlu0 %502
  %504 = vrot.lane.b32.xlu0 %v488, 127
  %v505 = vpop.permute.xlu0 %504
  %506 = vrot.lane.b32.xlu0 %v489, 127
  %v507 = vpop.permute.xlu0 %506
  %vm514 = vcmask 785408
  %v516 = vsel %vm514, %v483, 0
  %518 = vmatprep.subr.bf16.mxu0 0
  %519 = vmatpush1.bf16.msra.mxu0 0
  %520 = vmatprep.subr.bf16.mxu0 0
  %521 = vmatpush1.bf16.msra.mxu0 0
  %522 = vmatprep.subr.bf16.mxu0 0
  %523 = vmatpush1.bf16.msra.mxu0 %v507
  %524 = vmatprep.subr.bf16.mxu0 0
  %525 = vmatpush1.bf16.msra.mxu0 %v505
  %526 = vmatprep.subr.bf16.mxu0 0
  %527 = vmatpush1.bf16.msra.mxu0 %v503
  %528 = vmatprep.subr.bf16.mxu0 0
  %529 = vmatpush1.bf16.msra.mxu0 %v501
  %530 = vmatprep.subr.bf16.mxu0 0
  %531 = vmatpush1.bf16.msra.mxu0 %v499
  %532 = vmatprep.subr.bf16.mxu0 0
  %533 = vmatpush1.bf16.msra.mxu0 %v497
  %534 = vmatprep.subr.bf16.mxu0 0
  %535 = vmatpush2.bf16.msra.mxu0 0
  %536 = vmatprep.subr.bf16.mxu0 0
  %537 = vmatpush2.bf16.msra.mxu0 0
  %538 = vmatprep.subr.bf16.mxu0 0
  %539 = vmatpush2.bf16.msra.mxu0 0
  %540 = vmatprep.subr.bf16.mxu0 0
  %541 = vmatpush2.bf16.msra.mxu0 0
  %542 = vmatprep.subr.bf16.mxu0 0
  %543 = vmatpush2.bf16.msra.mxu0 0
  %544 = vmatprep.subr.bf16.mxu0 0
  %545 = vmatpush2.bf16.msra.mxu0 0
  %546 = vmatprep.subr.bf16.mxu0 0
  %547 = vmatpush2.bf16.msra.mxu0 0
  %548 = vmatprep.subr.bf16.mxu0 0
  %549 = vmatpush2.bf16.msra.mxu0 0
  %550 = vmatprep.mubr.bf16.mxu0 0
  %551 = vmatmul.mubr.bf16.gmra.mxu0 %v516
  %v552 = vpop.f32.mrf.mxu0
  %v553 = vadd.f32 %v102, %v552
  %v554 = vpop.f32.mrf.mxu0
  %v555 = vpop.f32.mrf.mxu0
  %v556 = vpop.f32.mrf.mxu0
  %557 = vdwg.mxu0
  %v558 = vmax.f32 %v553, 0.0
  %v559 = vld [vmem:[%s0] sm:$0xf]
  %v561 = vrot.slane %v558, 4
  %v563 = vsel %vm130, %v559, %v561
  %vm564 = vcmask 130048
  %v566 = vsel %vm564, %v563, 0
  %v568 = vsel %vm564, %v561, 0
  %570 = vmatprep.subr.mxu0 0.0
  %571 = vmatpush1.msra.mxu0 0.0
  %572 = vmatprep.subr.mxu0 0.0
  %573 = vmatpush1.msra.mxu0 0.0
  %574 = vmatprep.subr.mxu0 0.0
  %575 = vmatpush1.msra.mxu0 0.0
  %576 = vmatprep.subr.mxu0 0.0
  %577 = vmatpush1.msra.mxu0 0.0
  %578 = vmatprep.subr.mxu0 0.0
  %579 = vmatpush1.msra.mxu0 0.0
  %580 = vmatprep.subr.mxu0 0.0
  %581 = vmatpush1.msra.mxu0 0.0
  %582 = vmatprep.subr.mxu0 0.0
  %583 = vmatpush1.msra.mxu0 0.0
  %584 = vmatprep.subr.mxu0 0.0
  %585 = vmatpush1.msra.mxu0 0.0
  %586 = vmatprep.subr.mxu0 0.0
  %587 = vmatpush1.msra.mxu0 0.0
  %588 = vmatprep.subr.mxu0 0.0
  %589 = vmatpush1.msra.mxu0 0.0
  %590 = vmatprep.subr.mxu0 0.0
  %591 = vmatpush1.msra.mxu0 0.0
  %592 = vmatprep.subr.mxu0 0.0
  %593 = vmatpush1.msra.mxu0 0.0
  %594 = vmatprep.subr.mxu0 0.0
  %595 = vmatpush1.msra.mxu0 0.0
  %596 = vmatprep.subr.mxu0 0.0
  %597 = vmatpush1.msra.mxu0 0.0
  %598 = vmatprep.subr.mxu0 0.0
  %599 = vmatpush1.msra.mxu0 %v105
  %600 = vmatprep.subr.mxu0 0.0
  %601 = vmatpush1.msra.mxu0 %v104
  %602 = vmatprep.subr.mxu0 0.0
  %603 = vmatpush2.msra.mxu0 0.0
  %604 = vmatprep.subr.mxu0 0.0
  %605 = vmatpush2.msra.mxu0 0.0
  %606 = vmatprep.subr.mxu0 0.0
  %607 = vmatpush2.msra.mxu0 0.0
  %608 = vmatprep.subr.mxu0 0.0
  %609 = vmatpush2.msra.mxu0 0.0
  %610 = vmatprep.subr.mxu0 0.0
  %611 = vmatpush2.msra.mxu0 0.0
  %612 = vmatprep.subr.mxu0 0.0
  %613 = vmatpush2.msra.mxu0 0.0
  %614 = vmatprep.subr.mxu0 0.0
  %615 = vmatpush2.msra.mxu0 0.0
  %616 = vmatprep.subr.mxu0 0.0
  %617 = vmatpush2.msra.mxu0 0.0
  %618 = vmatprep.subr.mxu0 0.0
  %619 = vmatpush2.msra.mxu0 0.0
  %620 = vmatprep.subr.mxu0 0.0
  %621 = vmatpush2.msra.mxu0 0.0
  %622 = vmatprep.subr.mxu0 0.0
  %623 = vmatpush2.msra.mxu0 0.0
  %624 = vmatprep.subr.mxu0 0.0
  %625 = vmatpush2.msra.mxu0 0.0
  %626 = vmatprep.subr.mxu0 0.0
  %627 = vmatpush2.msra.mxu0 0.0
  %628 = vmatprep.subr.mxu0 0.0
  %629 = vmatpush2.msra.mxu0 0.0
  %630 = vmatprep.subr.mxu0 0.0
  %631 = vmatpush2.msra.mxu0 0.0
  %632 = vmatprep.subr.mxu0 0.0
  %633 = vmatpush2.msra.mxu0 0.0
  %634 = vmatprep.mubr.f32.mxu0 0.0
  %635 = vmatmul.mubr.f32.gmra.mxu0 %v566
  %v636 = vpop.f32.mrf.mxu0
  %v637 = vadd.f32 0.0, %v636
  %v638 = vpop.f32.mrf.mxu0
  %639 = vmatprep.mubr.f32.mxu0 0.0
  %640 = vmatmul.mubr.f32.gmra.mxu0 %v568
  %v641 = vpop.f32.mrf.mxu0
  %v642 = vadd.f32 0.0, %v641
  %v643 = vpop.f32.mrf.mxu0
  %644 = vdwg.mxu0
  %645 = vmatprep.subr.mxu0 0.0
  %646 = vmatpush1.msra.mxu0 0.0
  %647 = vmatprep.subr.mxu0 0.0
  %648 = vmatpush1.msra.mxu0 0.0
  %649 = vmatprep.subr.mxu0 0.0
  %650 = vmatpush1.msra.mxu0 0.0
  %651 = vmatprep.subr.mxu0 0.0
  %652 = vmatpush1.msra.mxu0 0.0
  %653 = vmatprep.subr.mxu0 0.0
  %654 = vmatpush1.msra.mxu0 0.0
  %655 = vmatprep.subr.mxu0 0.0
  %656 = vmatpush1.msra.mxu0 0.0
  %657 = vmatprep.subr.mxu0 0.0
  %658 = vmatpush1.msra.mxu0 0.0
  %659 = vmatprep.subr.mxu0 0.0
  %660 = vmatpush1.msra.mxu0 0.0
  %661 = vmatprep.subr.mxu0 0.0
  %662 = vmatpush1.msra.mxu0 0.0
  %663 = vmatprep.subr.mxu0 0.0
  %664 = vmatpush1.msra.mxu0 0.0
  %665 = vmatprep.subr.mxu0 0.0
  %666 = vmatpush1.msra.mxu0 0.0
  %667 = vmatprep.subr.mxu0 0.0
  %668 = vmatpush1.msra.mxu0 0.0
  %669 = vmatprep.subr.mxu0 0.0
  %670 = vmatpush1.msra.mxu0 0.0
  %671 = vmatprep.subr.mxu0 0.0
  %672 = vmatpush1.msra.mxu0 0.0
  %673 = vmatprep.subr.mxu0 0.0
  %674 = vmatpush1.msra.mxu0 %v107
  %675 = vmatprep.subr.mxu0 0.0
  %676 = vmatpush1.msra.mxu0 %v106
  %677 = vmatprep.subr.mxu0 0.0
  %678 = vmatpush2.msra.mxu0 0.0
  %679 = vmatprep.subr.mxu0 0.0
  %680 = vmatpush2.msra.mxu0 0.0
  %681 = vmatprep.subr.mxu0 0.0
  %682 = vmatpush2.msra.mxu0 0.0
  %683 = vmatprep.subr.mxu0 0.0
  %684 = vmatpush2.msra.mxu0 0.0
  %685 = vmatprep.subr.mxu0 0.0
  %686 = vmatpush2.msra.mxu0 0.0
  %687 = vmatprep.subr.mxu0 0.0
  %688 = vmatpush2.msra.mxu0 0.0
  %689 = vmatprep.subr.mxu0 0.0
  %690 = vmatpush2.msra.mxu0 0.0
  %691 = vmatprep.subr.mxu0 0.0
  %692 = vmatpush2.msra.mxu0 0.0
  %693 = vmatprep.subr.mxu0 0.0
  %694 = vmatpush2.msra.mxu0 0.0
  %695 = vmatprep.subr.mxu0 0.0
  %696 = vmatpush2.msra.mxu0 0.0
  %697 = vmatprep.subr.mxu0 0.0
  %698 = vmatpush2.msra.mxu0 0.0
  %699 = vmatprep.subr.mxu0 0.0
  %700 = vmatpush2.msra.mxu0 0.0
  %701 = vmatprep.subr.mxu0 0.0
  %702 = vmatpush2.msra.mxu0 0.0
  %703 = vmatprep.subr.mxu0 0.0
  %704 = vmatpush2.msra.mxu0 0.0
  %705 = vmatprep.subr.mxu0 0.0
  %706 = vmatpush2.msra.mxu0 0.0
  %707 = vmatprep.subr.mxu0 0.0
  %708 = vmatpush2.msra.mxu0 0.0
  %709 = vmatprep.mubr.f32.mxu0 0.0
  %710 = vmatmul.mubr.f32.gmra.mxu0 %v566
  %v711 = vpop.f32.mrf.mxu0
  %v712 = vadd.f32 0.0, %v711
  %v713 = vpop.f32.mrf.mxu0
  %714 = vmatprep.mubr.f32.mxu0 0.0
  %715 = vmatmul.mubr.f32.gmra.mxu0 %v568
  %v716 = vpop.f32.mrf.mxu0
  %v717 = vadd.f32 0.0, %v716
  %v718 = vpop.f32.mrf.mxu0
  %719 = vdwg.mxu0
  %v720 = vmax.f32 %v637, %v712
  %v721 = vmax.f32 %v642, %v717
  %vm722 = vcmask 64512
  %723 = vst.msk [vmem:[%s10] sm:$0xff] %vm722, %v720
  %vm724 = vcmask 60416
  %725 = vst.msk [vmem:[%s10 + $0x8] sm:$0xf] %vm724, %v721
  %s726 = scalar_lea.vmem %s0, 4
  %v727 = vld [vmem:[%s726] sm:$0xf]
  %729 = vrot.lane.b32.xlu0 %v727, 2
  %v730 = vpop.permute.xlu0 %729
  %732 = vst.msk [vmem:[#allocation2] sm:$0xf] %vm113, %v730
  %v733 = vld [vmem:[#allocation2] sm:$0xf]
  %v735 = vrot.slane %v733, 4
  %736 = vrot.lane.b32.xlu0 %v735, 127
  %v737 = vpop.permute.xlu0 %736
  %739 = vrot.lane.b32.xlu0 %v733, 126
  %v740 = vpop.permute.xlu0 %739
  %742 = vrot.lane.b32.xlu0 %v735, 125
  %v743 = vpop.permute.xlu0 %742
  %745 = vrot.lane.b32.xlu0 %v733, 124
  %v746 = vpop.permute.xlu0 %745
  %v748 = vsel %vm130, %v733, %v737
  %v749 = vsel %vm130, %v740, %v743
  %v750 = vld [vmem:[%s2] sm:$0xf]
  %v751 = vld [vmem:[%s2 + $0x4] sm:$0xf]
  %v752 = vld [vmem:[%s2 + $0x8] sm:$0xf]
  %v753 = vpack.c.bf16 %v749, %v748
  %v754 = vpack.c.bf16 %v746, %v746
  %v758 = vunpack.c.l.b16 %v750
  %v759 = vunpack.c.l.b16 %v751
  %v760 = vunpack.c.l.b16 %v752
  %v761 = vpack.c.b16 %v759, %v758
  %v762 = vpack.c.b16 %v760, %v760
  %v764 = vsel %vm146, %v761, 0
  %v767 = vsel %vm146, %v762, 0
  %v770 = vsel %vm153, %v754, 0
  %772 = vmatprep.subr.bf16.mxu0 0
  %773 = vmatpush1.bf16.msra.mxu0 0
  %774 = vmatprep.subr.bf16.mxu0 0
  %775 = vmatpush1.bf16.msra.mxu0 0
  %776 = vmatprep.subr.bf16.mxu0 0
  %777 = vmatpush1.bf16.msra.mxu0 0
  %778 = vmatprep.subr.bf16.mxu0 0
  %779 = vmatpush1.bf16.msra.mxu0 0
  %780 = vmatprep.subr.bf16.mxu0 0
  %781 = vmatpush1.bf16.msra.mxu0 0
  %782 = vmatprep.subr.bf16.mxu0 0
  %783 = vmatpush1.bf16.msra.mxu0 0
  %784 = vmatprep.subr.bf16.mxu0 0
  %785 = vmatpush1.bf16.msra.mxu0 %v770
  %786 = vmatprep.subr.bf16.mxu0 0
  %787 = vmatpush1.bf16.msra.mxu0 %v753
  %788 = vmatprep.subr.bf16.mxu0 0
  %789 = vmatpush2.bf16.msra.mxu0 0
  %790 = vmatprep.subr.bf16.mxu0 0
  %791 = vmatpush2.bf16.msra.mxu0 0
  %792 = vmatprep.subr.bf16.mxu0 0
  %793 = vmatpush2.bf16.msra.mxu0 0
  %794 = vmatprep.subr.bf16.mxu0 0
  %795 = vmatpush2.bf16.msra.mxu0 0
  %796 = vmatprep.subr.bf16.mxu0 0
  %797 = vmatpush2.bf16.msra.mxu0 0
  %798 = vmatprep.subr.bf16.mxu0 0
  %799 = vmatpush2.bf16.msra.mxu0 0
  %800 = vmatprep.subr.bf16.mxu0 0
  %801 = vmatpush2.bf16.msra.mxu0 0
  %802 = vmatprep.subr.bf16.mxu0 0
  %803 = vmatpush2.bf16.msra.mxu0 0
  %804 = vmatprep.mubr.bf16.mxu0 0
  %805 = vmatmul.mubr.bf16.gmra.mxu0 %v764
  %v806 = vpop.f32.mrf.mxu0
  %v807 = vadd.f32 %v62, %v806
  %v808 = vpop.f32.mrf.mxu0
  %v809 = vpop.f32.mrf.mxu0
  %v810 = vadd.f32 %v67, %v809
  %v811 = vpop.f32.mrf.mxu0
  %812 = vmatprep.mubr.bf16.mxu0 0
  %813 = vmatmul.mubr.bf16.gmra.mxu0 %v767
  %v814 = vpop.f32.mrf.mxu0
  %v815 = vadd.f32 %v72, %v814
  %v816 = vpop.f32.mrf.mxu0
  %v817 = vpop.f32.mrf.mxu0
  %v818 = vpop.f32.mrf.mxu0
  %819 = vdwg.mxu0
  %v820 = vmax.f32 %v807, 0.0
  %v821 = vmax.f32 %v810, 0.0
  %v822 = vmax.f32 %v815, 0.0
  %826 = vrot.lane.b32.xlu0 %v820, 2
  %v827 = vpop.permute.xlu0 %826
  %828 = vrot.lane.b32.xlu0 %v821, 2
  %v829 = vpop.permute.xlu0 %828
  %830 = vrot.lane.b32.xlu0 %v822, 2
  %v831 = vpop.permute.xlu0 %830
  %835 = vst.msk [vmem:[#allocation2 + $0x4] sm:$0xff] %vm220, %v827
  %836 = vst.msk [vmem:[#allocation2 + $0xc] sm:$0xff] %vm220, %v829
  %837 = vst.msk [vmem:[#allocation2 + $0x14] sm:$0xff] %vm220, %v831
  %v838 = vld [vmem:[#allocation2] sm:$0xff]
  %v839 = vld [vmem:[#allocation2 + $0x8] sm:$0xff]
  %v840 = vld [vmem:[#allocation2 + $0x10] sm:$0xff]
  %v841 = vld [vmem:[#allocation2 + $0x18] sm:$0xf]
  %v846 = vrot.slane %v838, 4
  %v847 = vrot.slane %v839, 4
  %v848 = vsel %vm130, %v846, %v847
  %v849 = vrot.slane %v840, 4
  %v850 = vsel %vm130, %v847, %v849
  %v851 = vrot.slane %v841, 4
  %v852 = vsel %vm130, %v849, %v851
  %853 = vrot.lane.b32.xlu0 %v846, 127
  %v854 = vpop.permute.xlu0 %853
  %855 = vrot.lane.b32.xlu0 %v848, 127
  %v856 = vpop.permute.xlu0 %855
  %857 = vrot.lane.b32.xlu0 %v850, 127
  %v858 = vpop.permute.xlu0 %857
  %859 = vrot.lane.b32.xlu0 %v852, 127
  %v860 = vpop.permute.xlu0 %859
  %865 = vrot.lane.b32.xlu0 %v838, 126
  %v866 = vpop.permute.xlu0 %865
  %867 = vrot.lane.b32.xlu0 %v839, 126
  %v868 = vpop.permute.xlu0 %867
  %869 = vrot.lane.b32.xlu0 %v840, 126
  %v870 = vpop.permute.xlu0 %869
  %871 = vrot.lane.b32.xlu0 %v841, 126
  %v872 = vpop.permute.xlu0 %871
  %v877 = vsel %vm130, %v841, %v854
  %v878 = vld [vmem:[%s4] sm:$0xf]
  %v879 = vpack.c.bf16 %v839, %v838
  %v880 = vpack.c.bf16 %v877, %v840
  %v881 = vpack.c.bf16 %v858, %v856
  %v882 = vpack.c.bf16 %v866, %v860
  %v883 = vpack.c.bf16 %v870, %v868
  %v884 = vpack.c.bf16 %v872, %v872
  %891 = vrot.lane.b32.xlu0 %v879, 127
  %v892 = vpop.permute.xlu0 %891
  %893 = vrot.lane.b32.xlu0 %v880, 127
  %v894 = vpop.permute.xlu0 %893
  %895 = vrot.lane.b32.xlu0 %v881, 127
  %v896 = vpop.permute.xlu0 %895
  %897 = vrot.lane.b32.xlu0 %v882, 127
  %v898 = vpop.permute.xlu0 %897
  %899 = vrot.lane.b32.xlu0 %v883, 127
  %v900 = vpop.permute.xlu0 %899
  %901 = vrot.lane.b32.xlu0 %v884, 127
  %v902 = vpop.permute.xlu0 %901
  %v909 = vsel %vm294, %v878, 0
  %v912 = vsel %vm153, %v902, 0
  %914 = vmatprep.subr.bf16.mxu0 0
  %915 = vmatpush1.bf16.msra.mxu0 0
  %916 = vmatprep.subr.bf16.mxu0 0
  %917 = vmatpush1.bf16.msra.mxu0 0
  %918 = vmatprep.subr.bf16.mxu0 0
  %919 = vmatpush1.bf16.msra.mxu0 %v912
  %920 = vmatprep.subr.bf16.mxu0 0
  %921 = vmatpush1.bf16.msra.mxu0 %v900
  %922 = vmatprep.subr.bf16.mxu0 0
  %923 = vmatpush1.bf16.msra.mxu0 %v898
  %924 = vmatprep.subr.bf16.mxu0 0
  %925 = vmatpush1.bf16.msra.mxu0 %v896
  %926 = vmatprep.subr.bf16.mxu0 0
  %927 = vmatpush1.bf16.msra.mxu0 %v894
  %928 = vmatprep.subr.bf16.mxu0 0
  %929 = vmatpush1.bf16.msra.mxu0 %v892
  %930 = vmatprep.subr.bf16.mxu0 0
  %931 = vmatpush2.bf16.msra.mxu0 0
  %932 = vmatprep.subr.bf16.mxu0 0
  %933 = vmatpush2.bf16.msra.mxu0 0
  %934 = vmatprep.subr.bf16.mxu0 0
  %935 = vmatpush2.bf16.msra.mxu0 0
  %936 = vmatprep.subr.bf16.mxu0 0
  %937 = vmatpush2.bf16.msra.mxu0 0
  %938 = vmatprep.subr.bf16.mxu0 0
  %939 = vmatpush2.bf16.msra.mxu0 0
  %940 = vmatprep.subr.bf16.mxu0 0
  %941 = vmatpush2.bf16.msra.mxu0 0
  %942 = vmatprep.subr.bf16.mxu0 0
  %943 = vmatpush2.bf16.msra.mxu0 0
  %944 = vmatprep.subr.bf16.mxu0 0
  %945 = vmatpush2.bf16.msra.mxu0 0
  %946 = vmatprep.mubr.bf16.mxu0 0
  %947 = vmatmul.mubr.bf16.gmra.mxu0 %v909
  %v948 = vpop.f32.mrf.mxu0
  %v949 = vadd.f32 %v78, %v948
  %v950 = vpop.f32.mrf.mxu0
  %v951 = vpop.f32.mrf.mxu0
  %v952 = vpop.f32.mrf.mxu0
  %953 = vdwg.mxu0
  %v954 = vmax.f32 %v949, 0.0
  %956 = vrot.lane.b32.xlu0 %v954, 2
  %v957 = vpop.permute.xlu0 %956
  %959 = vst.msk [vmem:[#allocation3] sm:$0xff] %vm220, %v957
  %v960 = vld [vmem:[#allocation3] sm:$0xff]
  %962 = vrot.lane.b32.xlu0 %v960, 127
  %v963 = vpop.permute.xlu0 %962
  %965 = vrot.lane.b32.xlu0 %v960, 126
  %v966 = vpop.permute.xlu0 %965
  %968 = vrot.lane.b32.xlu0 %v960, 125
  %v969 = vpop.permute.xlu0 %968
  %971 = vrot.lane.b32.xlu0 %v960, 124
  %v972 = vpop.permute.xlu0 %971
  %v974 = vld [vmem:[%s6] sm:$0xf]
  %v975 = vld [vmem:[%s6 + $0x4] sm:$0xf]
  %v976 = vld [vmem:[%s6 + $0x8] sm:$0xf]
  %v977 = vpack.c.bf16 %v963, %v960
  %v978 = vpack.c.bf16 %v969, %v966
  %v979 = vpack.c.bf16 %v972, %v972
  %v983 = vunpack.c.l.b16 %v974
  %v984 = vunpack.c.l.b16 %v975
  %v985 = vunpack.c.l.b16 %v976
  %v986 = vpack.c.b16 %v984, %v983
  %v987 = vpack.c.b16 %v985, %v985
  %v989 = vsel %vm375, %v986, 0
  %v992 = vsel %vm375, %v987, 0
  %v995 = vsel %vm130, %v979, 0
  %997 = vmatprep.subr.bf16.mxu0 0
  %998 = vmatpush1.bf16.msra.mxu0 0
  %999 = vmatprep.subr.bf16.mxu0 0
  %1000 = vmatpush1.bf16.msra.mxu0 0
  %1001 = vmatprep.subr.bf16.mxu0 0
  %1002 = vmatpush1.bf16.msra.mxu0 0
  %1003 = vmatprep.subr.bf16.mxu0 0
  %1004 = vmatpush1.bf16.msra.mxu0 0
  %1005 = vmatprep.subr.bf16.mxu0 0
  %1006 = vmatpush1.bf16.msra.mxu0 0
  %1007 = vmatprep.subr.bf16.mxu0 0
  %1008 = vmatpush1.bf16.msra.mxu0 %v995
  %1009 = vmatprep.subr.bf16.mxu0 0
  %1010 = vmatpush1.bf16.msra.mxu0 %v978
  %1011 = vmatprep.subr.bf16.mxu0 0
  %1012 = vmatpush1.bf16.msra.mxu0 %v977
  %1013 = vmatprep.subr.bf16.mxu0 0
  %1014 = vmatpush2.bf16.msra.mxu0 0
  %1015 = vmatprep.subr.bf16.mxu0 0
  %1016 = vmatpush2.bf16.msra.mxu0 0
  %1017 = vmatprep.subr.bf16.mxu0 0
  %1018 = vmatpush2.bf16.msra.mxu0 0
  %1019 = vmatprep.subr.bf16.mxu0 0
  %1020 = vmatpush2.bf16.msra.mxu0 0
  %1021 = vmatprep.subr.bf16.mxu0 0
  %1022 = vmatpush2.bf16.msra.mxu0 0
  %1023 = vmatprep.subr.bf16.mxu0 0
  %1024 = vmatpush2.bf16.msra.mxu0 0
  %1025 = vmatprep.subr.bf16.mxu0 0
  %1026 = vmatpush2.bf16.msra.mxu0 0
  %1027 = vmatprep.subr.bf16.mxu0 0
  %1028 = vmatpush2.bf16.msra.mxu0 0
  %1029 = vmatprep.mubr.bf16.mxu0 0
  %1030 = vmatmul.mubr.bf16.gmra.mxu0 %v989
  %v1031 = vpop.f32.mrf.mxu0
  %v1032 = vadd.f32 %v86, %v1031
  %v1033 = vpop.f32.mrf.mxu0
  %v1034 = vpop.f32.mrf.mxu0
  %v1035 = vadd.f32 %v91, %v1034
  %v1036 = vpop.f32.mrf.mxu0
  %1037 = vmatprep.mubr.bf16.mxu0 0
  %1038 = vmatmul.mubr.bf16.gmra.mxu0 %v992
  %v1039 = vpop.f32.mrf.mxu0
  %v1040 = vadd.f32 %v96, %v1039
  %v1041 = vpop.f32.mrf.mxu0
  %v1042 = vpop.f32.mrf.mxu0
  %v1043 = vpop.f32.mrf.mxu0
  %1044 = vdwg.mxu0
  %v1045 = vmax.f32 %v1032, 0.0
  %v1046 = vmax.f32 %v1035, 0.0
  %v1047 = vmax.f32 %v1040, 0.0
  %1051 = vrot.lane.b32.xlu0 %v1045, 2
  %v1052 = vpop.permute.xlu0 %1051
  %1053 = vrot.lane.b32.xlu0 %v1046, 2
  %v1054 = vpop.permute.xlu0 %1053
  %1055 = vrot.lane.b32.xlu0 %v1047, 2
  %v1056 = vpop.permute.xlu0 %1055
  %1060 = vst.msk [vmem:[#allocation3 + $0x8] sm:$0xff] %vm220, %v1052
  %1061 = vst.msk [vmem:[#allocation3 + $0x10] sm:$0xff] %vm220, %v1054
  %1062 = vst.msk [vmem:[#allocation3 + $0x18] sm:$0xff] %vm220, %v1056
  %v1063 = vld [vmem:[#allocation3] sm:$0xff]
  %v1064 = vld [vmem:[#allocation3 + $0x8] sm:$0xff]
  %v1065 = vld [vmem:[#allocation3 + $0x10] sm:$0xff]
  %v1066 = vld [vmem:[#allocation3 + $0x18] sm:$0xff]
  %1071 = vrot.lane.b32.xlu0 %v1063, 127
  %v1072 = vpop.permute.xlu0 %1071
  %1073 = vrot.lane.b32.xlu0 %v1064, 127
  %v1074 = vpop.permute.xlu0 %1073
  %1075 = vrot.lane.b32.xlu0 %v1065, 127
  %v1076 = vpop.permute.xlu0 %1075
  %1077 = vrot.lane.b32.xlu0 %v1066, 127
  %v1078 = vpop.permute.xlu0 %1077
  %1083 = vrot.lane.b32.xlu0 %v1063, 126
  %v1084 = vpop.permute.xlu0 %1083
  %1085 = vrot.lane.b32.xlu0 %v1064, 126
  %v1086 = vpop.permute.xlu0 %1085
  %1087 = vrot.lane.b32.xlu0 %v1065, 126
  %v1088 = vpop.permute.xlu0 %1087
  %1089 = vrot.lane.b32.xlu0 %v1066, 126
  %v1090 = vpop.permute.xlu0 %1089
  %v1095 = vld [vmem:[%s8] sm:$0xf]
  %v1096 = vpack.c.bf16 %v1064, %v1063
  %v1097 = vpack.c.bf16 %v1066, %v1065
  %v1098 = vpack.c.bf16 %v1074, %v1072
  %v1099 = vpack.c.bf16 %v1078, %v1076
  %v1100 = vpack.c.bf16 %v1086, %v1084
  %v1101 = vpack.c.bf16 %v1090, %v1088
  %1108 = vrot.lane.b32.xlu0 %v1096, 127
  %v1109 = vpop.permute.xlu0 %1108
  %1110 = vrot.lane.b32.xlu0 %v1097, 127
  %v1111 = vpop.permute.xlu0 %1110
  %1112 = vrot.lane.b32.xlu0 %v1098, 127
  %v1113 = vpop.permute.xlu0 %1112
  %1114 = vrot.lane.b32.xlu0 %v1099, 127
  %v1115 = vpop.permute.xlu0 %1114
  %1116 = vrot.lane.b32.xlu0 %v1100, 127
  %v1117 = vpop.permute.xlu0 %1116
  %1118 = vrot.lane.b32.xlu0 %v1101, 127
  %v1119 = vpop.permute.xlu0 %1118
  %v1127 = vsel %vm514, %v1095, 0
  %1129 = vmatprep.subr.bf16.mxu0 0
  %1130 = vmatpush1.bf16.msra.mxu0 0
  %1131 = vmatprep.subr.bf16.mxu0 0
  %1132 = vmatpush1.bf16.msra.mxu0 0
  %1133 = vmatprep.subr.bf16.mxu0 0
  %1134 = vmatpush1.bf16.msra.mxu0 %v1119
  %1135 = vmatprep.subr.bf16.mxu0 0
  %1136 = vmatpush1.bf16.msra.mxu0 %v1117
  %1137 = vmatprep.subr.bf16.mxu0 0
  %1138 = vmatpush1.bf16.msra.mxu0 %v1115
  %1139 = vmatprep.subr.bf16.mxu0 0
  %1140 = vmatpush1.bf16.msra.mxu0 %v1113
  %1141 = vmatprep.subr.bf16.mxu0 0
  %1142 = vmatpush1.bf16.msra.mxu0 %v1111
  %1143 = vmatprep.subr.bf16.mxu0 0
  %1144 = vmatpush1.bf16.msra.mxu0 %v1109
  %1145 = vmatprep.subr.bf16.mxu0 0
  %1146 = vmatpush2.bf16.msra.mxu0 0
  %1147 = vmatprep.subr.bf16.mxu0 0
  %1148 = vmatpush2.bf16.msra.mxu0 0
  %1149 = vmatprep.subr.bf16.mxu0 0
  %1150 = vmatpush2.bf16.msra.mxu0 0
  %1151 = vmatprep.subr.bf16.mxu0 0
  %1152 = vmatpush2.bf16.msra.mxu0 0
  %1153 = vmatprep.subr.bf16.mxu0 0
  %1154 = vmatpush2.bf16.msra.mxu0 0
  %1155 = vmatprep.subr.bf16.mxu0 0
  %1156 = vmatpush2.bf16.msra.mxu0 0
  %1157 = vmatprep.subr.bf16.mxu0 0
  %1158 = vmatpush2.bf16.msra.mxu0 0
  %1159 = vmatprep.subr.bf16.mxu0 0
  %1160 = vmatpush2.bf16.msra.mxu0 0
  %1161 = vmatprep.mubr.bf16.mxu0 0
  %1162 = vmatmul.mubr.bf16.gmra.mxu0 %v1127
  %v1163 = vpop.f32.mrf.mxu0
  %v1164 = vadd.f32 %v102, %v1163
  %v1165 = vpop.f32.mrf.mxu0
  %v1166 = vpop.f32.mrf.mxu0
  %v1167 = vpop.f32.mrf.mxu0
  %1168 = vdwg.mxu0
  %v1169 = vmax.f32 %v1164, 0.0
  %v1170 = vld [vmem:[%s726] sm:$0xf]
  %v1172 = vrot.slane %v1169, 4
  %v1174 = vsel %vm130, %v1170, %v1172
  %v1176 = vsel %vm564, %v1174, 0
  %v1178 = vsel %vm564, %v1172, 0
  %1180 = vmatprep.subr.mxu0 0.0
  %1181 = vmatpush1.msra.mxu0 0.0
  %1182 = vmatprep.subr.mxu0 0.0
  %1183 = vmatpush1.msra.mxu0 0.0
  %1184 = vmatprep.subr.mxu0 0.0
  %1185 = vmatpush1.msra.mxu0 0.0
  %1186 = vmatprep.subr.mxu0 0.0
  %1187 = vmatpush1.msra.mxu0 0.0
  %1188 = vmatprep.subr.mxu0 0.0
  %1189 = vmatpush1.msra.mxu0 0.0
  %1190 = vmatprep.subr.mxu0 0.0
  %1191 = vmatpush1.msra.mxu0 0.0
  %1192 = vmatprep.subr.mxu0 0.0
  %1193 = vmatpush1.msra.mxu0 0.0
  %1194 = vmatprep.subr.mxu0 0.0
  %1195 = vmatpush1.msra.mxu0 0.0
  %1196 = vmatprep.subr.mxu0 0.0
  %1197 = vmatpush1.msra.mxu0 0.0
  %1198 = vmatprep.subr.mxu0 0.0
  %1199 = vmatpush1.msra.mxu0 0.0
  %1200 = vmatprep.subr.mxu0 0.0
  %1201 = vmatpush1.msra.mxu0 0.0
  %1202 = vmatprep.subr.mxu0 0.0
  %1203 = vmatpush1.msra.mxu0 0.0
  %1204 = vmatprep.subr.mxu0 0.0
  %1205 = vmatpush1.msra.mxu0 0.0
  %1206 = vmatprep.subr.mxu0 0.0
  %1207 = vmatpush1.msra.mxu0 0.0
  %1208 = vmatprep.subr.mxu0 0.0
  %1209 = vmatpush1.msra.mxu0 %v105
  %1210 = vmatprep.subr.mxu0 0.0
  %1211 = vmatpush1.msra.mxu0 %v104
  %1212 = vmatprep.subr.mxu0 0.0
  %1213 = vmatpush2.msra.mxu0 0.0
  %1214 = vmatprep.subr.mxu0 0.0
  %1215 = vmatpush2.msra.mxu0 0.0
  %1216 = vmatprep.subr.mxu0 0.0
  %1217 = vmatpush2.msra.mxu0 0.0
  %1218 = vmatprep.subr.mxu0 0.0
  %1219 = vmatpush2.msra.mxu0 0.0
  %1220 = vmatprep.subr.mxu0 0.0
  %1221 = vmatpush2.msra.mxu0 0.0
  %1222 = vmatprep.subr.mxu0 0.0
  %1223 = vmatpush2.msra.mxu0 0.0
  %1224 = vmatprep.subr.mxu0 0.0
  %1225 = vmatpush2.msra.mxu0 0.0
  %1226 = vmatprep.subr.mxu0 0.0
  %1227 = vmatpush2.msra.mxu0 0.0
  %1228 = vmatprep.subr.mxu0 0.0
  %1229 = vmatpush2.msra.mxu0 0.0
  %1230 = vmatprep.subr.mxu0 0.0
  %1231 = vmatpush2.msra.mxu0 0.0
  %1232 = vmatprep.subr.mxu0 0.0
  %1233 = vmatpush2.msra.mxu0 0.0
  %1234 = vmatprep.subr.mxu0 0.0
  %1235 = vmatpush2.msra.mxu0 0.0
  %1236 = vmatprep.subr.mxu0 0.0
  %1237 = vmatpush2.msra.mxu0 0.0
  %1238 = vmatprep.subr.mxu0 0.0
  %1239 = vmatpush2.msra.mxu0 0.0
  %1240 = vmatprep.subr.mxu0 0.0
  %1241 = vmatpush2.msra.mxu0 0.0
  %1242 = vmatprep.subr.mxu0 0.0
  %1243 = vmatpush2.msra.mxu0 0.0
  %1244 = vmatprep.mubr.f32.mxu0 0.0
  %1245 = vmatmul.mubr.f32.gmra.mxu0 %v1176
  %v1246 = vpop.f32.mrf.mxu0
  %v1247 = vadd.f32 0.0, %v1246
  %v1248 = vpop.f32.mrf.mxu0
  %1249 = vmatprep.mubr.f32.mxu0 0.0
  %1250 = vmatmul.mubr.f32.gmra.mxu0 %v1178
  %v1251 = vpop.f32.mrf.mxu0
  %v1252 = vadd.f32 0.0, %v1251
  %v1253 = vpop.f32.mrf.mxu0
  %1254 = vdwg.mxu0
  %1255 = vmatprep.subr.mxu0 0.0
  %1256 = vmatpush1.msra.mxu0 0.0
  %1257 = vmatprep.subr.mxu0 0.0
  %1258 = vmatpush1.msra.mxu0 0.0
  %1259 = vmatprep.subr.mxu0 0.0
  %1260 = vmatpush1.msra.mxu0 0.0
  %1261 = vmatprep.subr.mxu0 0.0
  %1262 = vmatpush1.msra.mxu0 0.0
  %1263 = vmatprep.subr.mxu0 0.0
  %1264 = vmatpush1.msra.mxu0 0.0
  %1265 = vmatprep.subr.mxu0 0.0
  %1266 = vmatpush1.msra.mxu0 0.0
  %1267 = vmatprep.subr.mxu0 0.0
  %1268 = vmatpush1.msra.mxu0 0.0
  %1269 = vmatprep.subr.mxu0 0.0
  %1270 = vmatpush1.msra.mxu0 0.0
  %1271 = vmatprep.subr.mxu0 0.0
  %1272 = vmatpush1.msra.mxu0 0.0
  %1273 = vmatprep.subr.mxu0 0.0
  %1274 = vmatpush1.msra.mxu0 0.0
  %1275 = vmatprep.subr.mxu0 0.0
  %1276 = vmatpush1.msra.mxu0 0.0
  %1277 = vmatprep.subr.mxu0 0.0
  %1278 = vmatpush1.msra.mxu0 0.0
  %1279 = vmatprep.subr.mxu0 0.0
  %1280 = vmatpush1.msra.mxu0 0.0
  %1281 = vmatprep.subr.mxu0 0.0
  %1282 = vmatpush1.msra.mxu0 0.0
  %1283 = vmatprep.subr.mxu0 0.0
  %1284 = vmatpush1.msra.mxu0 %v107
  %1285 = vmatprep.subr.mxu0 0.0
  %1286 = vmatpush1.msra.mxu0 %v106
  %1287 = vmatprep.subr.mxu0 0.0
  %1288 = vmatpush2.msra.mxu0 0.0
  %1289 = vmatprep.subr.mxu0 0.0
  %1290 = vmatpush2.msra.mxu0 0.0
  %1291 = vmatprep.subr.mxu0 0.0
  %1292 = vmatpush2.msra.mxu0 0.0
  %1293 = vmatprep.subr.mxu0 0.0
  %1294 = vmatpush2.msra.mxu0 0.0
  %1295 = vmatprep.subr.mxu0 0.0
  %1296 = vmatpush2.msra.mxu0 0.0
  %1297 = vmatprep.subr.mxu0 0.0
  %1298 = vmatpush2.msra.mxu0 0.0
  %1299 = vmatprep.subr.mxu0 0.0
  %1300 = vmatpush2.msra.mxu0 0.0
  %1301 = vmatprep.subr.mxu0 0.0
  %1302 = vmatpush2.msra.mxu0 0.0
  %1303 = vmatprep.subr.mxu0 0.0
  %1304 = vmatpush2.msra.mxu0 0.0
  %1305 = vmatprep.subr.mxu0 0.0
  %1306 = vmatpush2.msra.mxu0 0.0
  %1307 = vmatprep.subr.mxu0 0.0
  %1308 = vmatpush2.msra.mxu0 0.0
  %1309 = vmatprep.subr.mxu0 0.0
  %1310 = vmatpush2.msra.mxu0 0.0
  %1311 = vmatprep.subr.mxu0 0.0
  %1312 = vmatpush2.msra.mxu0 0.0
  %1313 = vmatprep.subr.mxu0 0.0
  %1314 = vmatpush2.msra.mxu0 0.0
  %1315 = vmatprep.subr.mxu0 0.0
  %1316 = vmatpush2.msra.mxu0 0.0
  %1317 = vmatprep.subr.mxu0 0.0
  %1318 = vmatpush2.msra.mxu0 0.0
  %1319 = vmatprep.mubr.f32.mxu0 0.0
  %1320 = vmatmul.mubr.f32.gmra.mxu0 %v1176
  %v1321 = vpop.f32.mrf.mxu0
  %v1322 = vadd.f32 0.0, %v1321
  %v1323 = vpop.f32.mrf.mxu0
  %1324 = vmatprep.mubr.f32.mxu0 0.0
  %1325 = vmatmul.mubr.f32.gmra.mxu0 %v1178
  %v1326 = vpop.f32.mrf.mxu0
  %v1327 = vadd.f32 0.0, %v1326
  %v1328 = vpop.f32.mrf.mxu0
  %1329 = vdwg.mxu0
  %v1330 = vmax.f32 %v1247, %v1322
  %v1331 = vmax.f32 %v1252, %v1327
  %s1332 = scalar_lea.vmem %s10, 16
  %1333 = vst.msk [vmem:[%s1332] sm:$0xff] %vm722, %v1330
  %1334 = vst.msk [vmem:[%s1332 + $0x8] sm:$0xf] %vm724, %v1331
  // Predicated region
  $region42: #{basic_block_fused.1} parent=0 // pred_check
    _
  $region43: #{basic_block_fused.1} parent=0 // pred_check_branch
    %1336 = sbr.rel (0) target = $region45
  $region44: #{basic_block_fused.1} parent=0 // pred_region
    _
  $region45: #{basic_block_fused.1} parent=0 // pred_fallthru
    _
  // Predicated region
  $region46: #{basic_block_fused.1} parent=0 // pred_check
    _
  $region47: #{basic_block_fused.1} parent=0 // pred_check_branch
    %1338 = sbr.rel (0) target = $region49
  $region48: #{basic_block_fused.1} parent=0 // pred_region
    _
  $region49: #{basic_block_fused.1} parent=0 // pred_fallthru
    _

</llo_original>
